<compile_context>
chip_gen: v6e
topology: v6e:2x2x1
jax: 0.10.0
libtpu: 0.0.40
codegen_flags: <defaults>
</compile_context>

<pallas_src>
import functools

import jax
import jax.numpy as jnp
from jax import lax
from jax.experimental import pallas as pl
from jax.experimental.pallas import tpu as pltpu


def _rnn_kernel(x_ref, h0_ref, w1_ref, b1_ref, wih_ref, whh_ref,
                b_gi_ref, b_hn_ref, y_ref, *, use_relu):
    T, B, O = y_ref.shape

    # ---------------- Phase 1: batched prologue (off the critical path) -----
    # fc1 + activation for all time steps at once: (T*B, I) @ (I, H)
    x = x_ref[...]
    z1 = jnp.dot(x, w1_ref[...], preferred_element_type=jnp.float32) + b1_ref[...]
    a = jnp.maximum(z1, 0.0) if use_relu else jnp.tanh(z1)                # (T*B, H)

    # Fused input-side gate projections for all time steps: (T*B, H) @ (H, 3O)
    # b_gi already contains bih[r,z,n] + bhh[r,z] (bhh[n] handled in the loop).
    gi = jnp.dot(a, wih_ref[...], preferred_element_type=jnp.float32) + b_gi_ref[...]

    # ---------------- Phase 2: sequential GRU recurrence ---------------------
    whh = whh_ref[...]          # (O, 3O) fused [r|z|n], resident in vregs/VMEM
    b_hn = b_hn_ref[...]        # (1, O)  = bhh for the n gate
    h = h0_ref[...]             # (B, O)

    # Statically unrolled: T is small and compile-time constant, all slices of
    # the live GI value are static (no scratch spill / reload, no dynamic
    # vector slicing).
    for t in range(T):
        g_i = gi[t * B:(t + 1) * B, :]                                    # (B, 3O)
        g_h = jnp.dot(h, whh, preferred_element_type=jnp.float32)         # (B, 3O)
        r = jax.nn.sigmoid(g_i[:, :O] + g_h[:, :O])
        z = jax.nn.sigmoid(g_i[:, O:2 * O] + g_h[:, O:2 * O])
        n = jnp.tanh(g_i[:, 2 * O:] + r * (g_h[:, 2 * O:] + b_hn))
        h = (1.0 - z) * n + z * h
        y_ref[t] = h.astype(y_ref.dtype)


def rnn_base_forward(params, inputs, rnn_states, *, use_relu=True):
    """Mirrors RNNBase.forward: returns (x_seq, hid[0], no_sequence)."""
    no_sequence = False
    if inputs.ndim == 2:
        inputs = inputs[None]
    if rnn_states.ndim == 2:
        rnn_states = rnn_states[None]

    inputs = inputs.astype(jnp.float32)
    rnn_states = rnn_states.astype(jnp.float32)

    T, B, I = inputs.shape
    H = params["w1"].shape[1]
    O = params["whh"].shape[0]
    h0 = rnn_states[0]                                                    # (B, O)

    # Fold bhh for the r and z gates into the batched input-side bias; keep
    # bhh[n] separate (it lives inside the r * (h @ W_hh_n + b_hh_n) term).
    b_gi = params["bih"] + params["bhh"].at[:, 2 * O:].set(0.0)           # (1, 3O)
    b_hn = params["bhh"][:, 2 * O:]                                       # (1, O)

    x2d = inputs.reshape(T * B, I)                                        # one big matmul operand

    kernel = functools.partial(_rnn_kernel, use_relu=use_relu)
    grid_spec = pltpu.PrefetchScalarGridSpec(
        num_scalar_prefetch=0,
        grid=(1,),                                  # single invocation: recurrence lives in-kernel
        in_specs=[
            pl.BlockSpec((T * B, I), lambda i: (0, 0)),     # inputs, time-flattened
            pl.BlockSpec((B, O), lambda i: (0, 0)),         # h0
            pl.BlockSpec((I, H), lambda i: (0, 0)),         # fc1 weight (transposed)
            pl.BlockSpec((1, H), lambda i: (0, 0)),         # fc1 bias
            pl.BlockSpec((H, 3 * O), lambda i: (0, 0)),     # W_ih fused [r|z|n] (transposed)
            pl.BlockSpec((O, 3 * O), lambda i: (0, 0)),     # W_hh fused [r|z|n] (transposed)
            pl.BlockSpec((1, 3 * O), lambda i: (0, 0)),     # bih + bhh[r,z] fused
            pl.BlockSpec((1, O), lambda i: (0, 0)),         # bhh[n]
        ],
        out_specs=pl.BlockSpec((T, B, O), lambda i: (0, 0, 0)),           # GRU outputs
    )

    y = pl.pallas_call(
        kernel,
        out_shape=jax.ShapeDtypeStruct((T, B, O), jnp.float32),
        grid_spec=grid_spec,
        compiler_params=pltpu.CompilerParams(dimension_semantics=("arbitrary",)),
    )(x2d, h0, params["w1"], params["b1"], params["wih"], params["whh"], b_gi, b_hn)

    hid = y[-1]   # single-layer GRU: final hidden state == last-step output
    return y, hid, no_sequence


def ref_forward(params, inputs, rnn_states, *, use_relu=True):
    """Pure-JAX reference matching PyTorch Linear+activation -> nn.GRU."""
    if inputs.ndim == 2:
        inputs = inputs[None]
    if rnn_states.ndim == 2:
        rnn_states = rnn_states[None]
    act = (lambda v: jnp.maximum(v, 0.0)) if use_relu else jnp.tanh
    a = act(inputs @ params["w1"] + params["b1"])                         # (T, B, H)
    wih, whh, bih, bhh = params["wih"], params["whh"], params["bih"], params["bhh"]
    O = whh.shape[0]

    def step(h, a_t):
        gi = a_t @ wih + bih                                              # (B, 3O)
        gh = h @ whh + bhh                                                # (B, 3O)
        r = jax.nn.sigmoid(gi[:, :O] + gh[:, :O])
        z = jax.nn.sigmoid(gi[:, O:2 * O] + gh[:, O:2 * O])
        n = jnp.tanh(gi[:, 2 * O:] + r * gh[:, 2 * O:])
        h_new = (1.0 - z) * n + z * h
        return h_new, h_new

    h_final, ys = lax.scan(step, rnn_states[0], a)
    return ys, h_final, False


def init_params(key, input_shape, hidden_size, out_shape, use_orthogonal=True):
    k1, k2, k3 = jax.random.split(key, 3)
    glorot = jax.nn.initializers.glorot_uniform()
    rnn_init = jax.nn.initializers.orthogonal() if use_orthogonal else glorot

    w1 = glorot(k1, (input_shape, hidden_size), jnp.float32)
    b1 = jnp.zeros((1, hidden_size), jnp.float32)

    kih = jax.random.split(k2, 3)
    khh = jax.random.split(k3, 3)
    # Gate order [r, z, n]; stored transposed and fused along the output axis.
    wih = jnp.concatenate([rnn_init(kih[g], (hidden_size, out_shape), jnp.float32)
                           for g in range(3)], axis=1)                    # (H, 3O)
    whh = jnp.concatenate([rnn_init(khh[g], (out_shape, out_shape), jnp.float32)
                           for g in range(3)], axis=1)                    # (O, 3O)
    bih = jnp.zeros((1, 3 * out_shape), jnp.float32)                      # GRU biases init to 0
    bhh = jnp.zeros((1, 3 * out_shape), jnp.float32)
    return {"w1": w1, "b1": b1, "wih": wih, "whh": whh, "bih": bih, "bhh": bhh}


if __name__ == "__main__":
    T, B, I, H, O = 8, 4, 32, 64, 64
    use_relu = True            # args.use_ReLU
    use_orthogonal = True      # args.use_orthogonal

    key = jax.random.PRNGKey(0)
    kp, kx, kh, kb1, kb2 = jax.random.split(key, 5)
    params = init_params(kp, I, H, O, use_orthogonal=use_orthogonal)
    # The module inits GRU biases to 0; perturb them here only to exercise the
    # bias-folding path in the numerics check (forward semantics unchanged).
    params["bih"] = 0.1 * jax.random.normal(kb1, (1, 3 * O), jnp.float32)
    params["bhh"] = 0.1 * jax.random.normal(kb2, (1, 3 * O), jnp.float32)

    inputs = jax.random.normal(kx, (T, B, I), jnp.float32)
    rnn_states = jax.random.normal(kh, (1, B, O), jnp.float32)

    y, hid, no_seq = rnn_base_forward(params, inputs, rnn_states, use_relu=use_relu)
    jax.block_until_ready((y, hid))

    y_ref, hid_ref, _ = ref_forward(params, inputs, rnn_states, use_relu=use_relu)
    assert y.shape == (T, B, O) and hid.shape == (B, O) and no_seq is False
    assert jnp.allclose(y, y_ref, atol=1e-4, rtol=1e-4)
    assert jnp.allclose(hid, hid_ref, atol=1e-4, rtol=1e-4)

    print("KERNEL_OK")
</pallas_src>

<mosaic_0001>
module attributes {stable_mosaic.version = 11 : i64} {
  func.func @_rnn_kernel(%arg0: i32, %arg1: memref<32x32xf32, #tpu.memory_space<vmem>>, %arg2: memref<4x64xf32, #tpu.memory_space<vmem>>, %arg3: memref<32x64xf32, #tpu.memory_space<vmem>>, %arg4: memref<1x64xf32, #tpu.memory_space<vmem>>, %arg5: memref<64x192xf32, #tpu.memory_space<vmem>>, %arg6: memref<64x192xf32, #tpu.memory_space<vmem>>, %arg7: memref<1x192xf32, #tpu.memory_space<vmem>>, %arg8: memref<1x64xf32, #tpu.memory_space<vmem>>, %arg9: memref<8x4x64xf32, #tpu.memory_space<vmem>>) attributes {dimension_semantics = [#tpu.dimension_semantics<arbitrary>], iteration_bounds = array<i64: 1>, scalar_prefetch = 0 : i64, scratch_operands = 0 : i64, tpu.core_type = #tpu.core_type<tc>, window_params = [{pipeline_mode = #tpu.pipeline_mode<synchronous>, transform_indices = @transform_0, window_bounds = array<i64: 32, 32>}, {pipeline_mode = #tpu.pipeline_mode<synchronous>, transform_indices = @transform_1, window_bounds = array<i64: 4, 64>}, {pipeline_mode = #tpu.pipeline_mode<synchronous>, transform_indices = @transform_2, window_bounds = array<i64: 32, 64>}, {pipeline_mode = #tpu.pipeline_mode<synchronous>, transform_indices = @transform_3, window_bounds = array<i64: 1, 64>}, {pipeline_mode = #tpu.pipeline_mode<synchronous>, transform_indices = @transform_4, window_bounds = array<i64: 64, 192>}, {pipeline_mode = #tpu.pipeline_mode<synchronous>, transform_indices = @transform_5, window_bounds = array<i64: 64, 192>}, {pipeline_mode = #tpu.pipeline_mode<synchronous>, transform_indices = @transform_6, window_bounds = array<i64: 1, 192>}, {pipeline_mode = #tpu.pipeline_mode<synchronous>, transform_indices = @transform_7, window_bounds = array<i64: 1, 64>}, {pipeline_mode = #tpu.pipeline_mode<synchronous>, transform_indices = @transform_8, window_bounds = array<i64: 8, 4, 64>}]} {
    %c0 = arith.constant 0 : index
    %c0_0 = arith.constant 0 : index
    %0 = vector.load %arg1[%c0, %c0_0] : memref<32x32xf32, #tpu.memory_space<vmem>>, vector<32x32xf32>
    %c0_1 = arith.constant 0 : index
    %c0_2 = arith.constant 0 : index
    %1 = vector.load %arg3[%c0_1, %c0_2] : memref<32x64xf32, #tpu.memory_space<vmem>>, vector<32x64xf32>
    %cst = arith.constant dense<0.000000e+00> : vector<32x64xf32>
    %2 = tpu.matmul %0, %1, %cst {dimension_numbers = #tpu.dot_dimension_numbers<[1], [0], [0], [1], [0, 0, 1, 1], [], []>} : vector<32x32xf32>, vector<32x64xf32>, vector<32x64xf32> -> vector<32x64xf32>
    %c0_3 = arith.constant 0 : index
    %c0_4 = arith.constant 0 : index
    %3 = vector.load %arg4[%c0_3, %c0_4] : memref<1x64xf32, #tpu.memory_space<vmem>>, vector<1x64xf32>
    %4 = vector.broadcast %3 : vector<1x64xf32> to vector<32x64xf32>
    %5 = arith.addf %2, %4 : vector<32x64xf32>
    %cst_5 = arith.constant 0.000000e+00 : f32
    %6 = vector.broadcast %cst_5 : f32 to vector<32x64xf32>
    %7 = arith.maximumf %5, %6 : vector<32x64xf32>
    %c0_6 = arith.constant 0 : index
    %c0_7 = arith.constant 0 : index
    %8 = vector.load %arg5[%c0_6, %c0_7] : memref<64x192xf32, #tpu.memory_space<vmem>>, vector<64x192xf32>
    %cst_8 = arith.constant dense<0.000000e+00> : vector<32x192xf32>
    %9 = tpu.matmul %7, %8, %cst_8 {dimension_numbers = #tpu.dot_dimension_numbers<[1], [0], [0], [1], [0, 0, 1, 1], [], []>} : vector<32x64xf32>, vector<64x192xf32>, vector<32x192xf32> -> vector<32x192xf32>
    %c0_9 = arith.constant 0 : index
    %c0_10 = arith.constant 0 : index
    %10 = vector.load %arg7[%c0_9, %c0_10] : memref<1x192xf32, #tpu.memory_space<vmem>>, vector<1x192xf32>
    %11 = vector.broadcast %10 : vector<1x192xf32> to vector<32x192xf32>
    %12 = arith.addf %9, %11 : vector<32x192xf32>
    %c0_11 = arith.constant 0 : index
    %c0_12 = arith.constant 0 : index
    %13 = vector.load %arg6[%c0_11, %c0_12] : memref<64x192xf32, #tpu.memory_space<vmem>>, vector<64x192xf32>
    %c0_13 = arith.constant 0 : index
    %c0_14 = arith.constant 0 : index
    %14 = vector.load %arg8[%c0_13, %c0_14] : memref<1x64xf32, #tpu.memory_space<vmem>>, vector<1x64xf32>
    %c0_15 = arith.constant 0 : index
    %c0_16 = arith.constant 0 : index
    %15 = vector.load %arg2[%c0_15, %c0_16] : memref<4x64xf32, #tpu.memory_space<vmem>>, vector<4x64xf32>
    %16 = vector.extract_strided_slice %12 {offsets = [0, 0], sizes = [4, 192], strides = [1, 1]} : vector<32x192xf32> to vector<4x192xf32>
    %cst_17 = arith.constant dense<0.000000e+00> : vector<4x192xf32>
    %17 = tpu.matmul %15, %13, %cst_17 {dimension_numbers = #tpu.dot_dimension_numbers<[1], [0], [0], [1], [0, 0, 1, 1], [], []>} : vector<4x64xf32>, vector<64x192xf32>, vector<4x192xf32> -> vector<4x192xf32>
    %18 = vector.extract_strided_slice %16 {offsets = [0, 0], sizes = [4, 64], strides = [1, 1]} : vector<4x192xf32> to vector<4x64xf32>
    %19 = vector.extract_strided_slice %17 {offsets = [0, 0], sizes = [4, 64], strides = [1, 1]} : vector<4x192xf32> to vector<4x64xf32>
    %20 = arith.addf %18, %19 : vector<4x64xf32>
    %21 = arith.negf %20 : vector<4x64xf32>
    %22 = math.exp %21 : vector<4x64xf32>
    %cst_18 = arith.constant 1.000000e+00 : f32
    %23 = vector.broadcast %cst_18 : f32 to vector<4x64xf32>
    %24 = arith.addf %23, %22 : vector<4x64xf32>
    %25 = arith.divf %23, %24 : vector<4x64xf32>
    %26 = vector.extract_strided_slice %16 {offsets = [0, 64], sizes = [4, 64], strides = [1, 1]} : vector<4x192xf32> to vector<4x64xf32>
    %27 = vector.extract_strided_slice %17 {offsets = [0, 64], sizes = [4, 64], strides = [1, 1]} : vector<4x192xf32> to vector<4x64xf32>
    %28 = arith.addf %26, %27 : vector<4x64xf32>
    %29 = arith.negf %28 : vector<4x64xf32>
    %30 = math.exp %29 : vector<4x64xf32>
    %cst_19 = arith.constant 1.000000e+00 : f32
    %31 = vector.broadcast %cst_19 : f32 to vector<4x64xf32>
    %32 = arith.addf %31, %30 : vector<4x64xf32>
    %33 = arith.divf %31, %32 : vector<4x64xf32>
    %34 = vector.extract_strided_slice %16 {offsets = [0, 128], sizes = [4, 64], strides = [1, 1]} : vector<4x192xf32> to vector<4x64xf32>
    %35 = vector.extract_strided_slice %17 {offsets = [0, 128], sizes = [4, 64], strides = [1, 1]} : vector<4x192xf32> to vector<4x64xf32>
    %36 = vector.broadcast %14 : vector<1x64xf32> to vector<4x64xf32>
    %37 = arith.addf %35, %36 : vector<4x64xf32>
    %38 = arith.mulf %25, %37 : vector<4x64xf32>
    %39 = arith.addf %34, %38 : vector<4x64xf32>
    %40 = math.tanh %39 : vector<4x64xf32>
    %cst_20 = arith.constant 1.000000e+00 : f32
    %41 = vector.broadcast %cst_20 : f32 to vector<4x64xf32>
    %42 = arith.subf %41, %33 : vector<4x64xf32>
    %43 = arith.mulf %42, %40 : vector<4x64xf32>
    %44 = arith.mulf %33, %15 : vector<4x64xf32>
    %45 = arith.addf %43, %44 : vector<4x64xf32>
    %c0_21 = arith.constant 0 : index
    %c0_22 = arith.constant 0 : index
    %c0_23 = arith.constant 0 : index
    %46 = vector.load %arg9[%c0_21, %c0_22, %c0_23] : memref<8x4x64xf32, #tpu.memory_space<vmem>>, vector<1x4x64xf32>
    %47 = vector.shape_cast %46 : vector<1x4x64xf32> to vector<4x64xf32>
    %48 = vector.shape_cast %45 : vector<4x64xf32> to vector<1x4x64xf32>
    tpu.vector_store %arg9[%c0_21, %c0_22, %c0_23], %48 {strides = array<i32>} : memref<8x4x64xf32, #tpu.memory_space<vmem>>, vector<1x4x64xf32>,
    %49 = vector.extract_strided_slice %12 {offsets = [4, 0], sizes = [4, 192], strides = [1, 1]} : vector<32x192xf32> to vector<4x192xf32>
    %cst_24 = arith.constant dense<0.000000e+00> : vector<4x192xf32>
    %50 = tpu.matmul %45, %13, %cst_24 {dimension_numbers = #tpu.dot_dimension_numbers<[1], [0], [0], [1], [0, 0, 1, 1], [], []>} : vector<4x64xf32>, vector<64x192xf32>, vector<4x192xf32> -> vector<4x192xf32>
    %51 = vector.extract_strided_slice %49 {offsets = [0, 0], sizes = [4, 64], strides = [1, 1]} : vector<4x192xf32> to vector<4x64xf32>
    %52 = vector.extract_strided_slice %50 {offsets = [0, 0], sizes = [4, 64], strides = [1, 1]} : vector<4x192xf32> to vector<4x64xf32>
    %53 = arith.addf %51, %52 : vector<4x64xf32>
    %54 = arith.negf %53 : vector<4x64xf32>
    %55 = math.exp %54 : vector<4x64xf32>
    %cst_25 = arith.constant 1.000000e+00 : f32
    %56 = vector.broadcast %cst_25 : f32 to vector<4x64xf32>
    %57 = arith.addf %56, %55 : vector<4x64xf32>
    %58 = arith.divf %56, %57 : vector<4x64xf32>
    %59 = vector.extract_strided_slice %49 {offsets = [0, 64], sizes = [4, 64], strides = [1, 1]} : vector<4x192xf32> to vector<4x64xf32>
    %60 = vector.extract_strided_slice %50 {offsets = [0, 64], sizes = [4, 64], strides = [1, 1]} : vector<4x192xf32> to vector<4x64xf32>
    %61 = arith.addf %59, %60 : vector<4x64xf32>
    %62 = arith.negf %61 : vector<4x64xf32>
    %63 = math.exp %62 : vector<4x64xf32>
    %cst_26 = arith.constant 1.000000e+00 : f32
    %64 = vector.broadcast %cst_26 : f32 to vector<4x64xf32>
    %65 = arith.addf %64, %63 : vector<4x64xf32>
    %66 = arith.divf %64, %65 : vector<4x64xf32>
    %67 = vector.extract_strided_slice %49 {offsets = [0, 128], sizes = [4, 64], strides = [1, 1]} : vector<4x192xf32> to vector<4x64xf32>
    %68 = vector.extract_strided_slice %50 {offsets = [0, 128], sizes = [4, 64], strides = [1, 1]} : vector<4x192xf32> to vector<4x64xf32>
    %69 = vector.broadcast %14 : vector<1x64xf32> to vector<4x64xf32>
    %70 = arith.addf %68, %69 : vector<4x64xf32>
    %71 = arith.mulf %58, %70 : vector<4x64xf32>
    %72 = arith.addf %67, %71 : vector<4x64xf32>
    %73 = math.tanh %72 : vector<4x64xf32>
    %cst_27 = arith.constant 1.000000e+00 : f32
    %74 = vector.broadcast %cst_27 : f32 to vector<4x64xf32>
    %75 = arith.subf %74, %66 : vector<4x64xf32>
    %76 = arith.mulf %75, %73 : vector<4x64xf32>
    %77 = arith.mulf %66, %45 : vector<4x64xf32>
    %78 = arith.addf %76, %77 : vector<4x64xf32>
    %c1 = arith.constant 1 : index
    %c0_28 = arith.constant 0 : index
    %c0_29 = arith.constant 0 : index
    %79 = vector.load %arg9[%c1, %c0_28, %c0_29] : memref<8x4x64xf32, #tpu.memory_space<vmem>>, vector<1x4x64xf32>
    %80 = vector.shape_cast %79 : vector<1x4x64xf32> to vector<4x64xf32>
    %81 = vector.shape_cast %78 : vector<4x64xf32> to vector<1x4x64xf32>
    tpu.vector_store %arg9[%c1, %c0_28, %c0_29], %81 {strides = array<i32>} : memref<8x4x64xf32, #tpu.memory_space<vmem>>, vector<1x4x64xf32>,
    %82 = vector.extract_strided_slice %12 {offsets = [8, 0], sizes = [4, 192], strides = [1, 1]} : vector<32x192xf32> to vector<4x192xf32>
    %cst_30 = arith.constant dense<0.000000e+00> : vector<4x192xf32>
    %83 = tpu.matmul %78, %13, %cst_30 {dimension_numbers = #tpu.dot_dimension_numbers<[1], [0], [0], [1], [0, 0, 1, 1], [], []>} : vector<4x64xf32>, vector<64x192xf32>, vector<4x192xf32> -> vector<4x192xf32>
    %84 = vector.extract_strided_slice %82 {offsets = [0, 0], sizes = [4, 64], strides = [1, 1]} : vector<4x192xf32> to vector<4x64xf32>
    %85 = vector.extract_strided_slice %83 {offsets = [0, 0], sizes = [4, 64], strides = [1, 1]} : vector<4x192xf32> to vector<4x64xf32>
    %86 = arith.addf %84, %85 : vector<4x64xf32>
    %87 = arith.negf %86 : vector<4x64xf32>
    %88 = math.exp %87 : vector<4x64xf32>
    %cst_31 = arith.constant 1.000000e+00 : f32
    %89 = vector.broadcast %cst_31 : f32 to vector<4x64xf32>
    %90 = arith.addf %89, %88 : vector<4x64xf32>
    %91 = arith.divf %89, %90 : vector<4x64xf32>
    %92 = vector.extract_strided_slice %82 {offsets = [0, 64], sizes = [4, 64], strides = [1, 1]} : vector<4x192xf32> to vector<4x64xf32>
    %93 = vector.extract_strided_slice %83 {offsets = [0, 64], sizes = [4, 64], strides = [1, 1]} : vector<4x192xf32> to vector<4x64xf32>
    %94 = arith.addf %92, %93 : vector<4x64xf32>
    %95 = arith.negf %94 : vector<4x64xf32>
    %96 = math.exp %95 : vector<4x64xf32>
    %cst_32 = arith.constant 1.000000e+00 : f32
    %97 = vector.broadcast %cst_32 : f32 to vector<4x64xf32>
    %98 = arith.addf %97, %96 : vector<4x64xf32>
    %99 = arith.divf %97, %98 : vector<4x64xf32>
    %100 = vector.extract_strided_slice %82 {offsets = [0, 128], sizes = [4, 64], strides = [1, 1]} : vector<4x192xf32> to vector<4x64xf32>
    %101 = vector.extract_strided_slice %83 {offsets = [0, 128], sizes = [4, 64], strides = [1, 1]} : vector<4x192xf32> to vector<4x64xf32>
    %102 = vector.broadcast %14 : vector<1x64xf32> to vector<4x64xf32>
    %103 = arith.addf %101, %102 : vector<4x64xf32>
    %104 = arith.mulf %91, %103 : vector<4x64xf32>
    %105 = arith.addf %100, %104 : vector<4x64xf32>
    %106 = math.tanh %105 : vector<4x64xf32>
    %cst_33 = arith.constant 1.000000e+00 : f32
    %107 = vector.broadcast %cst_33 : f32 to vector<4x64xf32>
    %108 = arith.subf %107, %99 : vector<4x64xf32>
    %109 = arith.mulf %108, %106 : vector<4x64xf32>
    %110 = arith.mulf %99, %78 : vector<4x64xf32>
    %111 = arith.addf %109, %110 : vector<4x64xf32>
    %c2 = arith.constant 2 : index
    %c0_34 = arith.constant 0 : index
    %c0_35 = arith.constant 0 : index
    %112 = vector.load %arg9[%c2, %c0_34, %c0_35] : memref<8x4x64xf32, #tpu.memory_space<vmem>>, vector<1x4x64xf32>
    %113 = vector.shape_cast %112 : vector<1x4x64xf32> to vector<4x64xf32>
    %114 = vector.shape_cast %111 : vector<4x64xf32> to vector<1x4x64xf32>
    tpu.vector_store %arg9[%c2, %c0_34, %c0_35], %114 {strides = array<i32>} : memref<8x4x64xf32, #tpu.memory_space<vmem>>, vector<1x4x64xf32>,
    %115 = vector.extract_strided_slice %12 {offsets = [12, 0], sizes = [4, 192], strides = [1, 1]} : vector<32x192xf32> to vector<4x192xf32>
    %cst_36 = arith.constant dense<0.000000e+00> : vector<4x192xf32>
    %116 = tpu.matmul %111, %13, %cst_36 {dimension_numbers = #tpu.dot_dimension_numbers<[1], [0], [0], [1], [0, 0, 1, 1], [], []>} : vector<4x64xf32>, vector<64x192xf32>, vector<4x192xf32> -> vector<4x192xf32>
    %117 = vector.extract_strided_slice %115 {offsets = [0, 0], sizes = [4, 64], strides = [1, 1]} : vector<4x192xf32> to vector<4x64xf32>
    %118 = vector.extract_strided_slice %116 {offsets = [0, 0], sizes = [4, 64], strides = [1, 1]} : vector<4x192xf32> to vector<4x64xf32>
    %119 = arith.addf %117, %118 : vector<4x64xf32>
    %120 = arith.negf %119 : vector<4x64xf32>
    %121 = math.exp %120 : vector<4x64xf32>
    %cst_37 = arith.constant 1.000000e+00 : f32
    %122 = vector.broadcast %cst_37 : f32 to vector<4x64xf32>
    %123 = arith.addf %122, %121 : vector<4x64xf32>
    %124 = arith.divf %122, %123 : vector<4x64xf32>
    %125 = vector.extract_strided_slice %115 {offsets = [0, 64], sizes = [4, 64], strides = [1, 1]} : vector<4x192xf32> to vector<4x64xf32>
    %126 = vector.extract_strided_slice %116 {offsets = [0, 64], sizes = [4, 64], strides = [1, 1]} : vector<4x192xf32> to vector<4x64xf32>
    %127 = arith.addf %125, %126 : vector<4x64xf32>
    %128 = arith.negf %127 : vector<4x64xf32>
    %129 = math.exp %128 : vector<4x64xf32>
    %cst_38 = arith.constant 1.000000e+00 : f32
    %130 = vector.broadcast %cst_38 : f32 to vector<4x64xf32>
    %131 = arith.addf %130, %129 : vector<4x64xf32>
    %132 = arith.divf %130, %131 : vector<4x64xf32>
    %133 = vector.extract_strided_slice %115 {offsets = [0, 128], sizes = [4, 64], strides = [1, 1]} : vector<4x192xf32> to vector<4x64xf32>
    %134 = vector.extract_strided_slice %116 {offsets = [0, 128], sizes = [4, 64], strides = [1, 1]} : vector<4x192xf32> to vector<4x64xf32>
    %135 = vector.broadcast %14 : vector<1x64xf32> to vector<4x64xf32>
    %136 = arith.addf %134, %135 : vector<4x64xf32>
    %137 = arith.mulf %124, %136 : vector<4x64xf32>
    %138 = arith.addf %133, %137 : vector<4x64xf32>
    %139 = math.tanh %138 : vector<4x64xf32>
    %cst_39 = arith.constant 1.000000e+00 : f32
    %140 = vector.broadcast %cst_39 : f32 to vector<4x64xf32>
    %141 = arith.subf %140, %132 : vector<4x64xf32>
    %142 = arith.mulf %141, %139 : vector<4x64xf32>
    %143 = arith.mulf %132, %111 : vector<4x64xf32>
    %144 = arith.addf %142, %143 : vector<4x64xf32>
    %c3 = arith.constant 3 : index
    %c0_40 = arith.constant 0 : index
    %c0_41 = arith.constant 0 : index
    %145 = vector.load %arg9[%c3, %c0_40, %c0_41] : memref<8x4x64xf32, #tpu.memory_space<vmem>>, vector<1x4x64xf32>
    %146 = vector.shape_cast %145 : vector<1x4x64xf32> to vector<4x64xf32>
    %147 = vector.shape_cast %144 : vector<4x64xf32> to vector<1x4x64xf32>
    tpu.vector_store %arg9[%c3, %c0_40, %c0_41], %147 {strides = array<i32>} : memref<8x4x64xf32, #tpu.memory_space<vmem>>, vector<1x4x64xf32>,
    %148 = vector.extract_strided_slice %12 {offsets = [16, 0], sizes = [4, 192], strides = [1, 1]} : vector<32x192xf32> to vector<4x192xf32>
    %cst_42 = arith.constant dense<0.000000e+00> : vector<4x192xf32>
    %149 = tpu.matmul %144, %13, %cst_42 {dimension_numbers = #tpu.dot_dimension_numbers<[1], [0], [0], [1], [0, 0, 1, 1], [], []>} : vector<4x64xf32>, vector<64x192xf32>, vector<4x192xf32> -> vector<4x192xf32>
    %150 = vector.extract_strided_slice %148 {offsets = [0, 0], sizes = [4, 64], strides = [1, 1]} : vector<4x192xf32> to vector<4x64xf32>
    %151 = vector.extract_strided_slice %149 {offsets = [0, 0], sizes = [4, 64], strides = [1, 1]} : vector<4x192xf32> to vector<4x64xf32>
    %152 = arith.addf %150, %151 : vector<4x64xf32>
    %153 = arith.negf %152 : vector<4x64xf32>
    %154 = math.exp %153 : vector<4x64xf32>
    %cst_43 = arith.constant 1.000000e+00 : f32
    %155 = vector.broadcast %cst_43 : f32 to vector<4x64xf32>
    %156 = arith.addf %155, %154 : vector<4x64xf32>
    %157 = arith.divf %155, %156 : vector<4x64xf32>
    %158 = vector.extract_strided_slice %148 {offsets = [0, 64], sizes = [4, 64], strides = [1, 1]} : vector<4x192xf32> to vector<4x64xf32>
    %159 = vector.extract_strided_slice %149 {offsets = [0, 64], sizes = [4, 64], strides = [1, 1]} : vector<4x192xf32> to vector<4x64xf32>
    %160 = arith.addf %158, %159 : vector<4x64xf32>
    %161 = arith.negf %160 : vector<4x64xf32>
    %162 = math.exp %161 : vector<4x64xf32>
    %cst_44 = arith.constant 1.000000e+00 : f32
    %163 = vector.broadcast %cst_44 : f32 to vector<4x64xf32>
    %164 = arith.addf %163, %162 : vector<4x64xf32>
    %165 = arith.divf %163, %164 : vector<4x64xf32>
    %166 = vector.extract_strided_slice %148 {offsets = [0, 128], sizes = [4, 64], strides = [1, 1]} : vector<4x192xf32> to vector<4x64xf32>
    %167 = vector.extract_strided_slice %149 {offsets = [0, 128], sizes = [4, 64], strides = [1, 1]} : vector<4x192xf32> to vector<4x64xf32>
    %168 = vector.broadcast %14 : vector<1x64xf32> to vector<4x64xf32>
    %169 = arith.addf %167, %168 : vector<4x64xf32>
    %170 = arith.mulf %157, %169 : vector<4x64xf32>
    %171 = arith.addf %166, %170 : vector<4x64xf32>
    %172 = math.tanh %171 : vector<4x64xf32>
    %cst_45 = arith.constant 1.000000e+00 : f32
    %173 = vector.broadcast %cst_45 : f32 to vector<4x64xf32>
    %174 = arith.subf %173, %165 : vector<4x64xf32>
    %175 = arith.mulf %174, %172 : vector<4x64xf32>
    %176 = arith.mulf %165, %144 : vector<4x64xf32>
    %177 = arith.addf %175, %176 : vector<4x64xf32>
    %c4 = arith.constant 4 : index
    %c0_46 = arith.constant 0 : index
    %c0_47 = arith.constant 0 : index
    %178 = vector.load %arg9[%c4, %c0_46, %c0_47] : memref<8x4x64xf32, #tpu.memory_space<vmem>>, vector<1x4x64xf32>
    %179 = vector.shape_cast %178 : vector<1x4x64xf32> to vector<4x64xf32>
    %180 = vector.shape_cast %177 : vector<4x64xf32> to vector<1x4x64xf32>
    tpu.vector_store %arg9[%c4, %c0_46, %c0_47], %180 {strides = array<i32>} : memref<8x4x64xf32, #tpu.memory_space<vmem>>, vector<1x4x64xf32>,
    %181 = vector.extract_strided_slice %12 {offsets = [20, 0], sizes = [4, 192], strides = [1, 1]} : vector<32x192xf32> to vector<4x192xf32>
    %cst_48 = arith.constant dense<0.000000e+00> : vector<4x192xf32>
    %182 = tpu.matmul %177, %13, %cst_48 {dimension_numbers = #tpu.dot_dimension_numbers<[1], [0], [0], [1], [0, 0, 1, 1], [], []>} : vector<4x64xf32>, vector<64x192xf32>, vector<4x192xf32> -> vector<4x192xf32>
    %183 = vector.extract_strided_slice %181 {offsets = [0, 0], sizes = [4, 64], strides = [1, 1]} : vector<4x192xf32> to vector<4x64xf32>
    %184 = vector.extract_strided_slice %182 {offsets = [0, 0], sizes = [4, 64], strides = [1, 1]} : vector<4x192xf32> to vector<4x64xf32>
    %185 = arith.addf %183, %184 : vector<4x64xf32>
    %186 = arith.negf %185 : vector<4x64xf32>
    %187 = math.exp %186 : vector<4x64xf32>
    %cst_49 = arith.constant 1.000000e+00 : f32
    %188 = vector.broadcast %cst_49 : f32 to vector<4x64xf32>
    %189 = arith.addf %188, %187 : vector<4x64xf32>
    %190 = arith.divf %188, %189 : vector<4x64xf32>
    %191 = vector.extract_strided_slice %181 {offsets = [0, 64], sizes = [4, 64], strides = [1, 1]} : vector<4x192xf32> to vector<4x64xf32>
    %192 = vector.extract_strided_slice %182 {offsets = [0, 64], sizes = [4, 64], strides = [1, 1]} : vector<4x192xf32> to vector<4x64xf32>
    %193 = arith.addf %191, %192 : vector<4x64xf32>
    %194 = arith.negf %193 : vector<4x64xf32>
    %195 = math.exp %194 : vector<4x64xf32>
    %cst_50 = arith.constant 1.000000e+00 : f32
    %196 = vector.broadcast %cst_50 : f32 to vector<4x64xf32>
    %197 = arith.addf %196, %195 : vector<4x64xf32>
    %198 = arith.divf %196, %197 : vector<4x64xf32>
    %199 = vector.extract_strided_slice %181 {offsets = [0, 128], sizes = [4, 64], strides = [1, 1]} : vector<4x192xf32> to vector<4x64xf32>
    %200 = vector.extract_strided_slice %182 {offsets = [0, 128], sizes = [4, 64], strides = [1, 1]} : vector<4x192xf32> to vector<4x64xf32>
    %201 = vector.broadcast %14 : vector<1x64xf32> to vector<4x64xf32>
    %202 = arith.addf %200, %201 : vector<4x64xf32>
    %203 = arith.mulf %190, %202 : vector<4x64xf32>
    %204 = arith.addf %199, %203 : vector<4x64xf32>
    %205 = math.tanh %204 : vector<4x64xf32>
    %cst_51 = arith.constant 1.000000e+00 : f32
    %206 = vector.broadcast %cst_51 : f32 to vector<4x64xf32>
    %207 = arith.subf %206, %198 : vector<4x64xf32>
    %208 = arith.mulf %207, %205 : vector<4x64xf32>
    %209 = arith.mulf %198, %177 : vector<4x64xf32>
    %210 = arith.addf %208, %209 : vector<4x64xf32>
    %c5 = arith.constant 5 : index
    %c0_52 = arith.constant 0 : index
    %c0_53 = arith.constant 0 : index
    %211 = vector.load %arg9[%c5, %c0_52, %c0_53] : memref<8x4x64xf32, #tpu.memory_space<vmem>>, vector<1x4x64xf32>
    %212 = vector.shape_cast %211 : vector<1x4x64xf32> to vector<4x64xf32>
    %213 = vector.shape_cast %210 : vector<4x64xf32> to vector<1x4x64xf32>
    tpu.vector_store %arg9[%c5, %c0_52, %c0_53], %213 {strides = array<i32>} : memref<8x4x64xf32, #tpu.memory_space<vmem>>, vector<1x4x64xf32>,
    %214 = vector.extract_strided_slice %12 {offsets = [24, 0], sizes = [4, 192], strides = [1, 1]} : vector<32x192xf32> to vector<4x192xf32>
    %cst_54 = arith.constant dense<0.000000e+00> : vector<4x192xf32>
    %215 = tpu.matmul %210, %13, %cst_54 {dimension_numbers = #tpu.dot_dimension_numbers<[1], [0], [0], [1], [0, 0, 1, 1], [], []>} : vector<4x64xf32>, vector<64x192xf32>, vector<4x192xf32> -> vector<4x192xf32>
    %216 = vector.extract_strided_slice %214 {offsets = [0, 0], sizes = [4, 64], strides = [1, 1]} : vector<4x192xf32> to vector<4x64xf32>
    %217 = vector.extract_strided_slice %215 {offsets = [0, 0], sizes = [4, 64], strides = [1, 1]} : vector<4x192xf32> to vector<4x64xf32>
    %218 = arith.addf %216, %217 : vector<4x64xf32>
    %219 = arith.negf %218 : vector<4x64xf32>
    %220 = math.exp %219 : vector<4x64xf32>
    %cst_55 = arith.constant 1.000000e+00 : f32
    %221 = vector.broadcast %cst_55 : f32 to vector<4x64xf32>
    %222 = arith.addf %221, %220 : vector<4x64xf32>
    %223 = arith.divf %221, %222 : vector<4x64xf32>
    %224 = vector.extract_strided_slice %214 {offsets = [0, 64], sizes = [4, 64], strides = [1, 1]} : vector<4x192xf32> to vector<4x64xf32>
    %225 = vector.extract_strided_slice %215 {offsets = [0, 64], sizes = [4, 64], strides = [1, 1]} : vector<4x192xf32> to vector<4x64xf32>
    %226 = arith.addf %224, %225 : vector<4x64xf32>
    %227 = arith.negf %226 : vector<4x64xf32>
    %228 = math.exp %227 : vector<4x64xf32>
    %cst_56 = arith.constant 1.000000e+00 : f32
    %229 = vector.broadcast %cst_56 : f32 to vector<4x64xf32>
    %230 = arith.addf %229, %228 : vector<4x64xf32>
    %231 = arith.divf %229, %230 : vector<4x64xf32>
    %232 = vector.extract_strided_slice %214 {offsets = [0, 128], sizes = [4, 64], strides = [1, 1]} : vector<4x192xf32> to vector<4x64xf32>
    %233 = vector.extract_strided_slice %215 {offsets = [0, 128], sizes = [4, 64], strides = [1, 1]} : vector<4x192xf32> to vector<4x64xf32>
    %234 = vector.broadcast %14 : vector<1x64xf32> to vector<4x64xf32>
    %235 = arith.addf %233, %234 : vector<4x64xf32>
    %236 = arith.mulf %223, %235 : vector<4x64xf32>
    %237 = arith.addf %232, %236 : vector<4x64xf32>
    %238 = math.tanh %237 : vector<4x64xf32>
    %cst_57 = arith.constant 1.000000e+00 : f32
    %239 = vector.broadcast %cst_57 : f32 to vector<4x64xf32>
    %240 = arith.subf %239, %231 : vector<4x64xf32>
    %241 = arith.mulf %240, %238 : vector<4x64xf32>
    %242 = arith.mulf %231, %210 : vector<4x64xf32>
    %243 = arith.addf %241, %242 : vector<4x64xf32>
    %c6 = arith.constant 6 : index
    %c0_58 = arith.constant 0 : index
    %c0_59 = arith.constant 0 : index
    %244 = vector.load %arg9[%c6, %c0_58, %c0_59] : memref<8x4x64xf32, #tpu.memory_space<vmem>>, vector<1x4x64xf32>
    %245 = vector.shape_cast %244 : vector<1x4x64xf32> to vector<4x64xf32>
    %246 = vector.shape_cast %243 : vector<4x64xf32> to vector<1x4x64xf32>
    tpu.vector_store %arg9[%c6, %c0_58, %c0_59], %246 {strides = array<i32>} : memref<8x4x64xf32, #tpu.memory_space<vmem>>, vector<1x4x64xf32>,
    %247 = vector.extract_strided_slice %12 {offsets = [28, 0], sizes = [4, 192], strides = [1, 1]} : vector<32x192xf32> to vector<4x192xf32>
    %cst_60 = arith.constant dense<0.000000e+00> : vector<4x192xf32>
    %248 = tpu.matmul %243, %13, %cst_60 {dimension_numbers = #tpu.dot_dimension_numbers<[1], [0], [0], [1], [0, 0, 1, 1], [], []>} : vector<4x64xf32>, vector<64x192xf32>, vector<4x192xf32> -> vector<4x192xf32>
    %249 = vector.extract_strided_slice %247 {offsets = [0, 0], sizes = [4, 64], strides = [1, 1]} : vector<4x192xf32> to vector<4x64xf32>
    %250 = vector.extract_strided_slice %248 {offsets = [0, 0], sizes = [4, 64], strides = [1, 1]} : vector<4x192xf32> to vector<4x64xf32>
    %251 = arith.addf %249, %250 : vector<4x64xf32>
    %252 = arith.negf %251 : vector<4x64xf32>
    %253 = math.exp %252 : vector<4x64xf32>
    %cst_61 = arith.constant 1.000000e+00 : f32
    %254 = vector.broadcast %cst_61 : f32 to vector<4x64xf32>
    %255 = arith.addf %254, %253 : vector<4x64xf32>
    %256 = arith.divf %254, %255 : vector<4x64xf32>
    %257 = vector.extract_strided_slice %247 {offsets = [0, 64], sizes = [4, 64], strides = [1, 1]} : vector<4x192xf32> to vector<4x64xf32>
    %258 = vector.extract_strided_slice %248 {offsets = [0, 64], sizes = [4, 64], strides = [1, 1]} : vector<4x192xf32> to vector<4x64xf32>
    %259 = arith.addf %257, %258 : vector<4x64xf32>
    %260 = arith.negf %259 : vector<4x64xf32>
    %261 = math.exp %260 : vector<4x64xf32>
    %cst_62 = arith.constant 1.000000e+00 : f32
    %262 = vector.broadcast %cst_62 : f32 to vector<4x64xf32>
    %263 = arith.addf %262, %261 : vector<4x64xf32>
    %264 = arith.divf %262, %263 : vector<4x64xf32>
    %265 = vector.extract_strided_slice %247 {offsets = [0, 128], sizes = [4, 64], strides = [1, 1]} : vector<4x192xf32> to vector<4x64xf32>
    %266 = vector.extract_strided_slice %248 {offsets = [0, 128], sizes = [4, 64], strides = [1, 1]} : vector<4x192xf32> to vector<4x64xf32>
    %267 = vector.broadcast %14 : vector<1x64xf32> to vector<4x64xf32>
    %268 = arith.addf %266, %267 : vector<4x64xf32>
    %269 = arith.mulf %256, %268 : vector<4x64xf32>
    %270 = arith.addf %265, %269 : vector<4x64xf32>
    %271 = math.tanh %270 : vector<4x64xf32>
    %cst_63 = arith.constant 1.000000e+00 : f32
    %272 = vector.broadcast %cst_63 : f32 to vector<4x64xf32>
    %273 = arith.subf %272, %264 : vector<4x64xf32>
    %274 = arith.mulf %273, %271 : vector<4x64xf32>
    %275 = arith.mulf %264, %243 : vector<4x64xf32>
    %276 = arith.addf %274, %275 : vector<4x64xf32>
    %c7 = arith.constant 7 : index
    %c0_64 = arith.constant 0 : index
    %c0_65 = arith.constant 0 : index
    %277 = vector.load %arg9[%c7, %c0_64, %c0_65] : memref<8x4x64xf32, #tpu.memory_space<vmem>>, vector<1x4x64xf32>
    %278 = vector.shape_cast %277 : vector<1x4x64xf32> to vector<4x64xf32>
    %279 = vector.shape_cast %276 : vector<4x64xf32> to vector<1x4x64xf32>
    tpu.vector_store %arg9[%c7, %c0_64, %c0_65], %279 {strides = array<i32>} : memref<8x4x64xf32, #tpu.memory_space<vmem>>, vector<1x4x64xf32>,
    return
  }
  func.func @transform_0(%arg0: i32) -> (i32, i32) {
    %c0_i32 = arith.constant 0 : i32
    %c0_i32_0 = arith.constant 0 : i32
    %c0_i32_1 = arith.constant 0 : i32
    return %c0_i32, %c0_i32_0 : i32, i32
  }
  func.func @transform_1(%arg0: i32) -> (i32, i32) {
    %c0_i32 = arith.constant 0 : i32
    %c0_i32_0 = arith.constant 0 : i32
    %c0_i32_1 = arith.constant 0 : i32
    return %c0_i32, %c0_i32_0 : i32, i32
  }
  func.func @transform_2(%arg0: i32) -> (i32, i32) {
    %c0_i32 = arith.constant 0 : i32
    %c0_i32_0 = arith.constant 0 : i32
    %c0_i32_1 = arith.constant 0 : i32
    return %c0_i32, %c0_i32_0 : i32, i32
  }
  func.func @transform_3(%arg0: i32) -> (i32, i32) {
    %c0_i32 = arith.constant 0 : i32
    %c0_i32_0 = arith.constant 0 : i32
    %c0_i32_1 = arith.constant 0 : i32
    return %c0_i32, %c0_i32_0 : i32, i32
  }
  func.func @transform_4(%arg0: i32) -> (i32, i32) {
    %c0_i32 = arith.constant 0 : i32
    %c0_i32_0 = arith.constant 0 : i32
    %c0_i32_1 = arith.constant 0 : i32
    return %c0_i32, %c0_i32_0 : i32, i32
  }
  func.func @transform_5(%arg0: i32) -> (i32, i32) {
    %c0_i32 = arith.constant 0 : i32
    %c0_i32_0 = arith.constant 0 : i32
    %c0_i32_1 = arith.constant 0 : i32
    return %c0_i32, %c0_i32_0 : i32, i32
  }
  func.func @transform_6(%arg0: i32) -> (i32, i32) {
    %c0_i32 = arith.constant 0 : i32
    %c0_i32_0 = arith.constant 0 : i32
    %c0_i32_1 = arith.constant 0 : i32
    return %c0_i32, %c0_i32_0 : i32, i32
  }
  func.func @transform_7(%arg0: i32) -> (i32, i32) {
    %c0_i32 = arith.constant 0 : i32
    %c0_i32_0 = arith.constant 0 : i32
    %c0_i32_1 = arith.constant 0 : i32
    return %c0_i32, %c0_i32_0 : i32, i32
  }
  func.func @transform_8(%arg0: i32) -> (i32, i32, i32) {
    %c0_i32 = arith.constant 0 : i32
    %c0_i32_0 = arith.constant 0 : i32
    %c0_i32_1 = arith.constant 0 : i32
    %c0_i32_2 = arith.constant 0 : i32
    return %c0_i32, %c0_i32_0, %c0_i32_1 : i32, i32, i32
  }
}

</mosaic_0001>

<llo_original>
// kernel: tpu_custom_call.1
$region0: #{tpu_custom_call.1}
  #allocation0 [shape = 'u32[]', space=smem, size = 0x4, offset = 0x4, fixed_abs, tag = 'smem constant byte address 0x4 - core index']
  #allocation1 [shape = 'u32[144,128]{1,0:T(1,128)}', space=vmem, size = 0x12000, scoped, tag = 'internal scratch']
  %s0 = inlined_call_operand.hbm [shape: f32[32,32], index: 0, kind: input, shape index: {}]
  %s1 = inlined_call_operand.hbm [shape: f32[4,64], index: 1, kind: input, shape index: {}]
  %s2 = inlined_call_operand.hbm [shape: f32[32,64], index: 2, kind: input, shape index: {}]
  %s3 = inlined_call_operand.vmem [shape: f32[1,64], index: 3, kind: input, shape index: {}]
  %s4 = inlined_call_operand.hbm [shape: f32[64,192], index: 4, kind: input, shape index: {}]
  %s5 = inlined_call_operand.hbm [shape: f32[64,192], index: 5, kind: input, shape index: {}]
  %s6 = inlined_call_operand.vmem [shape: f32[1,192], index: 6, kind: input, shape index: {}]
  %s7 = inlined_call_operand.vmem [shape: f32[1,64], index: 7, kind: input, shape index: {}]
  %s8 = inlined_call_operand.hbm [shape: f32[8,4,64], index: 8, kind: output, shape index: {}]
  %s9 = sld [smem:[#allocation0]]
  $region62: #{tpu_custom_call.1} parent=0
    _
  %s11 = ssub.s32 1, %s9
  %s12 = scalar_select 0, %s11, %s9
  $region1: #{tpu_custom_call.1} parent=0
    #allocation2 [shape = 'u8[16384]{0}', space=vmem, size = 0x4000, scoped, tag = 'input window, operand 0, single buffered']
    #allocation3 [shape = 's32[1]{0}', space=sflag, size = 0x4, scoped, tag = 'scoped memory for tpu_custom_call.1']
    #allocation4 [shape = 's32[1]{0}', space=sflag, size = 0x4, scoped, tag = 'scoped memory for tpu_custom_call.1']
    #allocation5 [shape = 'u8[2048]{0}', space=vmem, size = 0x800, scoped, tag = 'input window, operand 1, single buffered']
    #allocation6 [shape = 's32[1]{0}', space=sflag, size = 0x4, scoped, tag = 'scoped memory for tpu_custom_call.1']
    #allocation7 [shape = 'u8[16384]{0}', space=vmem, size = 0x4000, scoped, tag = 'input window, operand 2, single buffered']
    #allocation8 [shape = 'u8[65536]{0}', space=vmem, size = 0x10000, scoped, tag = 'input window, operand 4, single buffered']
    #allocation9 [shape = 's32[1]{0}', space=sflag, size = 0x4, scoped, tag = 'scoped memory for tpu_custom_call.1']
    #allocation10 [shape = 'u8[65536]{0}', space=vmem, size = 0x10000, scoped, tag = 'input window, operand 5, single buffered']
    #allocation11 [shape = 'u8[16384]{0}', space=vmem, size = 0x4000, scoped, tag = 'output window, operand 0, single buffered']
    %13 = vsyncpa [#allocation3], 0
    %14 = vsyncpa [#allocation6], 0
    %15 = vsyncpa [#allocation9], 0
    %16 = vsyncpa [#allocation4], 0
    // Predicated region
    $region2: #{tpu_custom_call.1} parent=1 // pred_check
      _
    $region3: #{tpu_custom_call.1} parent=1 // pred_check_branch
      %18 = sbr.rel (0) target = $region5
    $region4: #{tpu_custom_call.1} parent=1 // pred_region
      %s20 = ssub.s32 512, 512
      %21 = vsyncadd [#allocation3], %s20
      %s22 = sshll.u32 [#allocation2], 4
      %s23 = int_to_ptr.vmem [resolvable:$true] %s22
      %28 = dma.hbm_to_vmem [thread:$0]  %s0, 512, %s23, [#allocation3], 128, 128, 8
    $region5: #{tpu_custom_call.1} parent=1 // pred_fallthru
      _
    // Predicated region
    $region6: #{tpu_custom_call.1} parent=1 // pred_check
      _
    $region7: #{tpu_custom_call.1} parent=1 // pred_check_branch
      %30 = sbr.rel (0) target = $region9
    $region8: #{tpu_custom_call.1} parent=1 // pred_region
      %s32 = ssub.s32 64, 64
      %33 = vsyncadd [#allocation6], %s32
      %s35 = sshll.u32 [#allocation5], 4
      %s36 = int_to_ptr.vmem [resolvable:$true] %s35
      %38 = dma.hbm_to_vmem [thread:$0]  %s1, 64, %s36, [#allocation6]
    $region9: #{tpu_custom_call.1} parent=1 // pred_fallthru
      _
    // Predicated region
    $region10: #{tpu_custom_call.1} parent=1 // pred_check
      _
    $region11: #{tpu_custom_call.1} parent=1 // pred_check_branch
      %40 = sbr.rel (0) target = $region13
    $region12: #{tpu_custom_call.1} parent=1 // pred_region
      %s42 = ssub.s32 512, 512
      %43 = vsyncadd [#allocation6], %s42
      %s44 = sshll.u32 [#allocation7], 4
      %s45 = int_to_ptr.vmem [resolvable:$true] %s44
      %50 = dma.hbm_to_vmem [thread:$0]  %s2, 512, %s45, [#allocation6], 128, 128, 8
    $region13: #{tpu_custom_call.1} parent=1 // pred_fallthru
      _
    // Predicated region
    $region14: #{tpu_custom_call.1} parent=1 // pred_check
      _
    $region15: #{tpu_custom_call.1} parent=1 // pred_check_branch
      %52 = sbr.rel (0) target = $region17
    $region16: #{tpu_custom_call.1} parent=1 // pred_region
      _
    $region17: #{tpu_custom_call.1} parent=1 // pred_fallthru
      _
    // Predicated region
    $region18: #{tpu_custom_call.1} parent=1 // pred_check
      _
    $region19: #{tpu_custom_call.1} parent=1 // pred_check_branch
      %54 = sbr.rel (0) target = $region21
    $region20: #{tpu_custom_call.1} parent=1 // pred_region
      %s56 = ssub.s32 2048, 2048
      %57 = vsyncadd [#allocation9], %s56
      %s58 = sshll.u32 [#allocation8], 4
      %s59 = int_to_ptr.vmem [resolvable:$true] %s58
      %64 = dma.hbm_to_vmem [thread:$0]  %s4, 2048, %s59, [#allocation9], 256, 256, 16
    $region21: #{tpu_custom_call.1} parent=1 // pred_fallthru
      _
    // Predicated region
    $region22: #{tpu_custom_call.1} parent=1 // pred_check
      _
    $region23: #{tpu_custom_call.1} parent=1 // pred_check_branch
      %66 = sbr.rel (0) target = $region25
    $region24: #{tpu_custom_call.1} parent=1 // pred_region
      %s68 = ssub.s32 2048, 2048
      %69 = vsyncadd [#allocation9], %s68
      %s70 = sshll.u32 [#allocation10], 4
      %s71 = int_to_ptr.vmem [resolvable:$true] %s70
      %76 = dma.hbm_to_vmem [thread:$0]  %s5, 2048, %s71, [#allocation9], 256, 256, 16
    $region25: #{tpu_custom_call.1} parent=1 // pred_fallthru
      _
    // Predicated region
    $region26: #{tpu_custom_call.1} parent=1 // pred_check
      _
    $region27: #{tpu_custom_call.1} parent=1 // pred_check_branch
      %78 = sbr.rel (0) target = $region29
    $region28: #{tpu_custom_call.1} parent=1 // pred_region
      _
    $region29: #{tpu_custom_call.1} parent=1 // pred_fallthru
      _
    // Predicated region
    $region30: #{tpu_custom_call.1} parent=1 // pred_check
      _
    $region31: #{tpu_custom_call.1} parent=1 // pred_check_branch
      %80 = sbr.rel (0) target = $region33
    $region32: #{tpu_custom_call.1} parent=1 // pred_region
      _
    $region33: #{tpu_custom_call.1} parent=1 // pred_fallthru
      _
    // Predicated region
    $region34: #{tpu_custom_call.1} parent=1 // pred_check
      _
    $region35: #{tpu_custom_call.1} parent=1 // pred_check_branch
      %82 = sbr.rel (0) target = $region37
    $region36: #{tpu_custom_call.1} parent=1 // pred_region
      %83 = dma.done [#allocation3], 512
    $region37: #{tpu_custom_call.1} parent=1 // pred_fallthru
      _
    // Predicated region
    $region38: #{tpu_custom_call.1} parent=1 // pred_check
      _
    $region39: #{tpu_custom_call.1} parent=1 // pred_check_branch
      %85 = sbr.rel (0) target = $region41
    $region40: #{tpu_custom_call.1} parent=1 // pred_region
      %86 = dma.done [#allocation6], 64
    $region41: #{tpu_custom_call.1} parent=1 // pred_fallthru
      _
    // Predicated region
    $region42: #{tpu_custom_call.1} parent=1 // pred_check
      _
    $region43: #{tpu_custom_call.1} parent=1 // pred_check_branch
      %88 = sbr.rel (0) target = $region45
    $region44: #{tpu_custom_call.1} parent=1 // pred_region
      %89 = dma.done [#allocation6], 512
    $region45: #{tpu_custom_call.1} parent=1 // pred_fallthru
      _
    // Predicated region
    $region46: #{tpu_custom_call.1} parent=1 // pred_check
      _
    $region47: #{tpu_custom_call.1} parent=1 // pred_check_branch
      %91 = sbr.rel (0) target = $region49
    $region48: #{tpu_custom_call.1} parent=1 // pred_region
      %92 = dma.done [#allocation9], 2048
    $region49: #{tpu_custom_call.1} parent=1 // pred_fallthru
      _
    // Predicated region
    $region50: #{tpu_custom_call.1} parent=1 // pred_check
      _
    $region51: #{tpu_custom_call.1} parent=1 // pred_check_branch
      %94 = sbr.rel (0) target = $region53
    $region52: #{tpu_custom_call.1} parent=1 // pred_region
      %95 = dma.done [#allocation9], 2048
    $region53: #{tpu_custom_call.1} parent=1 // pred_fallthru
      _
    %v96 = vld [vmem:[#allocation2] sm:$0xff]
    %v97 = vld [vmem:[#allocation2 + $0x8] sm:$0xff]
    %v98 = vld [vmem:[#allocation2 + $0x10] sm:$0xff]
    %v99 = vld [vmem:[#allocation2 + $0x18] sm:$0xff]
    %v100 = vld [vmem:[#allocation7] sm:$0xff]
    %v101 = vld [vmem:[#allocation7 + $0x8] sm:$0xff]
    %v102 = vld [vmem:[#allocation7 + $0x10] sm:$0xff]
    %v103 = vld [vmem:[#allocation7 + $0x18] sm:$0xff]
    %v104 = vld [vmem:[%s3] sm:$0x1]
    %v106 = vlaneseq
    %v107 = vshrl.u32 %v106, 7
    %v108 = vsub.s32 0, %v107
    %v109 = vrot.slane %v104, %v108
    %vm111 = vcmask 261120
    %v113 = vsel %vm111, %v96, 0
    %v116 = vsel %vm111, %v97, 0
    %v119 = vsel %vm111, %v98, 0
    %v122 = vsel %vm111, %v99, 0
    %124 = vmatprep.subr.mxu0 0.0
    %125 = vmatpush1.msra.mxu0 0.0
    %126 = vmatprep.subr.mxu0 0.0
    %127 = vmatpush1.msra.mxu0 0.0
    %128 = vmatprep.subr.mxu0 0.0
    %129 = vmatpush1.msra.mxu0 0.0
    %130 = vmatprep.subr.mxu0 0.0
    %131 = vmatpush1.msra.mxu0 0.0
    %132 = vmatprep.subr.mxu0 0.0
    %133 = vmatpush1.msra.mxu0 0.0
    %134 = vmatprep.subr.mxu0 0.0
    %135 = vmatpush1.msra.mxu0 0.0
    %136 = vmatprep.subr.mxu0 0.0
    %137 = vmatpush1.msra.mxu0 0.0
    %138 = vmatprep.subr.mxu0 0.0
    %139 = vmatpush1.msra.mxu0 0.0
    %140 = vmatprep.subr.mxu0 0.0
    %141 = vmatpush1.msra.mxu0 0.0
    %142 = vmatprep.subr.mxu0 0.0
    %143 = vmatpush1.msra.mxu0 0.0
    %144 = vmatprep.subr.mxu0 0.0
    %145 = vmatpush1.msra.mxu0 0.0
    %146 = vmatprep.subr.mxu0 0.0
    %147 = vmatpush1.msra.mxu0 0.0
    %148 = vmatprep.subr.mxu0 0.0
    %149 = vmatpush1.msra.mxu0 %v103
    %150 = vmatprep.subr.mxu0 0.0
    %151 = vmatpush1.msra.mxu0 %v102
    %152 = vmatprep.subr.mxu0 0.0
    %153 = vmatpush1.msra.mxu0 %v101
    %154 = vmatprep.subr.mxu0 0.0
    %155 = vmatpush1.msra.mxu0 %v100
    %156 = vmatprep.subr.mxu0 0.0
    %157 = vmatpush2.msra.mxu0 0.0
    %158 = vmatprep.subr.mxu0 0.0
    %159 = vmatpush2.msra.mxu0 0.0
    %160 = vmatprep.subr.mxu0 0.0
    %161 = vmatpush2.msra.mxu0 0.0
    %162 = vmatprep.subr.mxu0 0.0
    %163 = vmatpush2.msra.mxu0 0.0
    %164 = vmatprep.subr.mxu0 0.0
    %165 = vmatpush2.msra.mxu0 0.0
    %166 = vmatprep.subr.mxu0 0.0
    %167 = vmatpush2.msra.mxu0 0.0
    %168 = vmatprep.subr.mxu0 0.0
    %169 = vmatpush2.msra.mxu0 0.0
    %170 = vmatprep.subr.mxu0 0.0
    %171 = vmatpush2.msra.mxu0 0.0
    %172 = vmatprep.subr.mxu0 0.0
    %173 = vmatpush2.msra.mxu0 0.0
    %174 = vmatprep.subr.mxu0 0.0
    %175 = vmatpush2.msra.mxu0 0.0
    %176 = vmatprep.subr.mxu0 0.0
    %177 = vmatpush2.msra.mxu0 0.0
    %178 = vmatprep.subr.mxu0 0.0
    %179 = vmatpush2.msra.mxu0 0.0
    %180 = vmatprep.subr.mxu0 0.0
    %181 = vmatpush2.msra.mxu0 0.0
    %182 = vmatprep.subr.mxu0 0.0
    %183 = vmatpush2.msra.mxu0 0.0
    %184 = vmatprep.subr.mxu0 0.0
    %185 = vmatpush2.msra.mxu0 0.0
    %186 = vmatprep.subr.mxu0 0.0
    %187 = vmatpush2.msra.mxu0 0.0
    %188 = vmatprep.mubr.f32.mxu0 0.0
    %189 = vmatmul.mubr.f32.gmra.mxu0 %v113
    %v190 = vpop.f32.mrf.mxu0
    %v191 = vadd.f32 %v109, %v190
    %v192 = vpop.f32.mrf.mxu0
    %193 = vmatprep.mubr.f32.mxu0 0.0
    %194 = vmatmul.mubr.f32.gmra.mxu0 %v116
    %v195 = vpop.f32.mrf.mxu0
    %v196 = vadd.f32 %v109, %v195
    %v197 = vpop.f32.mrf.mxu0
    %198 = vmatprep.mubr.f32.mxu0 0.0
    %199 = vmatmul.mubr.f32.gmra.mxu0 %v119
    %v200 = vpop.f32.mrf.mxu0
    %v201 = vadd.f32 %v109, %v200
    %v202 = vpop.f32.mrf.mxu0
    %203 = vmatprep.mubr.f32.mxu0 0.0
    %204 = vmatmul.mubr.f32.gmra.mxu0 %v122
    %v205 = vpop.f32.mrf.mxu0
    %v206 = vadd.f32 %v109, %v205
    %v207 = vpop.f32.mrf.mxu0
    %208 = vdwg.mxu0
    %v209 = vmax.f32 %v191, 0.0
    %v210 = vmax.f32 %v196, 0.0
    %v211 = vmax.f32 %v201, 0.0
    %v212 = vmax.f32 %v206, 0.0
    %v213 = vld [vmem:[#allocation8] sm:$0xff]
    %v214 = vld [vmem:[#allocation8 + $0x8] sm:$0xff]
    %v215 = vld [vmem:[#allocation8 + $0x10] sm:$0xff]
    %v216 = vld [vmem:[#allocation8 + $0x18] sm:$0xff]
    %v217 = vld [vmem:[#allocation8 + $0x20] sm:$0xff]
    %v218 = vld [vmem:[#allocation8 + $0x28] sm:$0xff]
    %v219 = vld [vmem:[#allocation8 + $0x30] sm:$0xff]
    %v220 = vld [vmem:[#allocation8 + $0x38] sm:$0xff]
    %v221 = vld [vmem:[#allocation8 + $0x40] sm:$0xff]
    %v222 = vld [vmem:[#allocation8 + $0x48] sm:$0xff]
    %v223 = vld [vmem:[#allocation8 + $0x50] sm:$0xff]
    %v224 = vld [vmem:[#allocation8 + $0x58] sm:$0xff]
    %v225 = vld [vmem:[#allocation8 + $0x60] sm:$0xff]
    %v226 = vld [vmem:[#allocation8 + $0x68] sm:$0xff]
    %v227 = vld [vmem:[#allocation8 + $0x70] sm:$0xff]
    %v228 = vld [vmem:[#allocation8 + $0x78] sm:$0xff]
    %v229 = vld [vmem:[%s6] sm:$0x3]
    %v231 = vlaneseq
    %v232 = vshrl.u32 %v231, 7
    %v233 = vsub.s32 0, %v232
    %v234 = vrot.slane %v229, %v233
    %v235 = vlaneseq
    %v236 = vshrl.u32 %v235, 7
    %v237 = vsub.s32 1, %v236
    %v238 = vrot.slane %v229, %v237
    %vm241 = vcmask 523264
    %v243 = vsel %vm241, %v209, 0
    %v246 = vsel %vm241, %v210, 0
    %v249 = vsel %vm241, %v211, 0
    %v252 = vsel %vm241, %v212, 0
    %254 = vmatprep.subr.mxu0 0.0
    %255 = vmatpush1.msra.mxu0 0.0
    %256 = vmatprep.subr.mxu0 0.0
    %257 = vmatpush1.msra.mxu0 0.0
    %258 = vmatprep.subr.mxu0 0.0
    %259 = vmatpush1.msra.mxu0 0.0
    %260 = vmatprep.subr.mxu0 0.0
    %261 = vmatpush1.msra.mxu0 0.0
    %262 = vmatprep.subr.mxu0 0.0
    %263 = vmatpush1.msra.mxu0 0.0
    %264 = vmatprep.subr.mxu0 0.0
    %265 = vmatpush1.msra.mxu0 0.0
    %266 = vmatprep.subr.mxu0 0.0
    %267 = vmatpush1.msra.mxu0 0.0
    %268 = vmatprep.subr.mxu0 0.0
    %269 = vmatpush1.msra.mxu0 0.0
    %270 = vmatprep.subr.mxu0 %v228
    %271 = vmatpush1.msra.mxu0 %v227
    %272 = vmatprep.subr.mxu0 %v226
    %273 = vmatpush1.msra.mxu0 %v225
    %274 = vmatprep.subr.mxu0 %v224
    %275 = vmatpush1.msra.mxu0 %v223
    %276 = vmatprep.subr.mxu0 %v222
    %277 = vmatpush1.msra.mxu0 %v221
    %278 = vmatprep.subr.mxu0 %v220
    %279 = vmatpush1.msra.mxu0 %v219
    %280 = vmatprep.subr.mxu0 %v218
    %281 = vmatpush1.msra.mxu0 %v217
    %282 = vmatprep.subr.mxu0 %v216
    %283 = vmatpush1.msra.mxu0 %v215
    %284 = vmatprep.subr.mxu0 %v214
    %285 = vmatpush1.msra.mxu0 %v213
    %286 = vmatprep.subr.mxu0 0.0
    %287 = vmatpush2.msra.mxu0 0.0
    %288 = vmatprep.subr.mxu0 0.0
    %289 = vmatpush2.msra.mxu0 0.0
    %290 = vmatprep.subr.mxu0 0.0
    %291 = vmatpush2.msra.mxu0 0.0
    %292 = vmatprep.subr.mxu0 0.0
    %293 = vmatpush2.msra.mxu0 0.0
    %294 = vmatprep.subr.mxu0 0.0
    %295 = vmatpush2.msra.mxu0 0.0
    %296 = vmatprep.subr.mxu0 0.0
    %297 = vmatpush2.msra.mxu0 0.0
    %298 = vmatprep.subr.mxu0 0.0
    %299 = vmatpush2.msra.mxu0 0.0
    %300 = vmatprep.subr.mxu0 0.0
    %301 = vmatpush2.msra.mxu0 0.0
    %302 = vmatprep.subr.mxu0 0.0
    %303 = vmatpush2.msra.mxu0 0.0
    %304 = vmatprep.subr.mxu0 0.0
    %305 = vmatpush2.msra.mxu0 0.0
    %306 = vmatprep.subr.mxu0 0.0
    %307 = vmatpush2.msra.mxu0 0.0
    %308 = vmatprep.subr.mxu0 0.0
    %309 = vmatpush2.msra.mxu0 0.0
    %310 = vmatprep.subr.mxu0 0.0
    %311 = vmatpush2.msra.mxu0 0.0
    %312 = vmatprep.subr.mxu0 0.0
    %313 = vmatpush2.msra.mxu0 0.0
    %314 = vmatprep.subr.mxu0 0.0
    %315 = vmatpush2.msra.mxu0 0.0
    %316 = vmatprep.subr.mxu0 0.0
    %317 = vmatpush2.msra.mxu0 0.0
    %318 = vmatprep.mubr.f32.mxu0 0.0
    %319 = vmatmul.mubr.f32.gmra.mxu0 %v243
    %v320 = vpop.f32.mrf.mxu0
    %v321 = vadd.f32 %v234, %v320
    %v322 = vpop.f32.mrf.mxu0
    %v323 = vadd.f32 %v238, %v322
    %324 = vmatprep.mubr.f32.mxu0 0.0
    %325 = vmatmul.mubr.f32.gmra.mxu0 %v246
    %v326 = vpop.f32.mrf.mxu0
    %v327 = vadd.f32 %v234, %v326
    %v328 = vpop.f32.mrf.mxu0
    %v329 = vadd.f32 %v238, %v328
    %330 = vmatprep.mubr.f32.mxu0 0.0
    %331 = vmatmul.mubr.f32.gmra.mxu0 %v249
    %v332 = vpop.f32.mrf.mxu0
    %v333 = vadd.f32 %v234, %v332
    %v334 = vpop.f32.mrf.mxu0
    %v335 = vadd.f32 %v238, %v334
    %336 = vmatprep.mubr.f32.mxu0 0.0
    %337 = vmatmul.mubr.f32.gmra.mxu0 %v252
    %v338 = vpop.f32.mrf.mxu0
    %v339 = vadd.f32 %v234, %v338
    %v340 = vpop.f32.mrf.mxu0
    %v341 = vadd.f32 %v238, %v340
    %342 = vdwg.mxu0
    %v343 = vld [vmem:[#allocation10] sm:$0xff]
    %v344 = vld [vmem:[#allocation10 + $0x8] sm:$0xff]
    %v345 = vld [vmem:[#allocation10 + $0x10] sm:$0xff]
    %v346 = vld [vmem:[#allocation10 + $0x18] sm:$0xff]
    %v347 = vld [vmem:[#allocation10 + $0x20] sm:$0xff]
    %v348 = vld [vmem:[#allocation10 + $0x28] sm:$0xff]
    %v349 = vld [vmem:[#allocation10 + $0x30] sm:$0xff]
    %v350 = vld [vmem:[#allocation10 + $0x38] sm:$0xff]
    %v351 = vld [vmem:[#allocation10 + $0x40] sm:$0xff]
    %v352 = vld [vmem:[#allocation10 + $0x48] sm:$0xff]
    %v353 = vld [vmem:[#allocation10 + $0x50] sm:$0xff]
    %v354 = vld [vmem:[#allocation10 + $0x58] sm:$0xff]
    %v355 = vld [vmem:[#allocation10 + $0x60] sm:$0xff]
    %v356 = vld [vmem:[#allocation10 + $0x68] sm:$0xff]
    %v357 = vld [vmem:[#allocation10 + $0x70] sm:$0xff]
    %v358 = vld [vmem:[#allocation10 + $0x78] sm:$0xff]
    %v359 = vld [vmem:[%s7] sm:$0x1]
    %v360 = vld [vmem:[#allocation5] sm:$0xf]
    %v362 = vsel %vm241, %v360, 0
    %364 = vmatprep.subr.mxu0 0.0
    %365 = vmatpush1.msra.mxu0 0.0
    %366 = vmatprep.subr.mxu0 0.0
    %367 = vmatpush1.msra.mxu0 0.0
    %368 = vmatprep.subr.mxu0 0.0
    %369 = vmatpush1.msra.mxu0 0.0
    %370 = vmatprep.subr.mxu0 0.0
    %371 = vmatpush1.msra.mxu0 0.0
    %372 = vmatprep.subr.mxu0 0.0
    %373 = vmatpush1.msra.mxu0 0.0
    %374 = vmatprep.subr.mxu0 0.0
    %375 = vmatpush1.msra.mxu0 0.0
    %376 = vmatprep.subr.mxu0 0.0
    %377 = vmatpush1.msra.mxu0 0.0
    %378 = vmatprep.subr.mxu0 0.0
    %379 = vmatpush1.msra.mxu0 0.0
    %380 = vmatprep.subr.mxu0 %v358
    %381 = vmatpush1.msra.mxu0 %v357
    %382 = vmatprep.subr.mxu0 %v356
    %383 = vmatpush1.msra.mxu0 %v355
    %384 = vmatprep.subr.mxu0 %v354
    %385 = vmatpush1.msra.mxu0 %v353
    %386 = vmatprep.subr.mxu0 %v352
    %387 = vmatpush1.msra.mxu0 %v351
    %388 = vmatprep.subr.mxu0 %v350
    %389 = vmatpush1.msra.mxu0 %v349
    %390 = vmatprep.subr.mxu0 %v348
    %391 = vmatpush1.msra.mxu0 %v347
    %392 = vmatprep.subr.mxu0 %v346
    %393 = vmatpush1.msra.mxu0 %v345
    %394 = vmatprep.subr.mxu0 %v344
    %395 = vmatpush1.msra.mxu0 %v343
    %396 = vmatprep.subr.mxu0 0.0
    %397 = vmatpush2.msra.mxu0 0.0
    %398 = vmatprep.subr.mxu0 0.0
    %399 = vmatpush2.msra.mxu0 0.0
    %400 = vmatprep.subr.mxu0 0.0
    %401 = vmatpush2.msra.mxu0 0.0
    %402 = vmatprep.subr.mxu0 0.0
    %403 = vmatpush2.msra.mxu0 0.0
    %404 = vmatprep.subr.mxu0 0.0
    %405 = vmatpush2.msra.mxu0 0.0
    %406 = vmatprep.subr.mxu0 0.0
    %407 = vmatpush2.msra.mxu0 0.0
    %408 = vmatprep.subr.mxu0 0.0
    %409 = vmatpush2.msra.mxu0 0.0
    %410 = vmatprep.subr.mxu0 0.0
    %411 = vmatpush2.msra.mxu0 0.0
    %412 = vmatprep.subr.mxu0 0.0
    %413 = vmatpush2.msra.mxu0 0.0
    %414 = vmatprep.subr.mxu0 0.0
    %415 = vmatpush2.msra.mxu0 0.0
    %416 = vmatprep.subr.mxu0 0.0
    %417 = vmatpush2.msra.mxu0 0.0
    %418 = vmatprep.subr.mxu0 0.0
    %419 = vmatpush2.msra.mxu0 0.0
    %420 = vmatprep.subr.mxu0 0.0
    %421 = vmatpush2.msra.mxu0 0.0
    %422 = vmatprep.subr.mxu0 0.0
    %423 = vmatpush2.msra.mxu0 0.0
    %424 = vmatprep.subr.mxu0 0.0
    %425 = vmatpush2.msra.mxu0 0.0
    %426 = vmatprep.subr.mxu0 0.0
    %427 = vmatpush2.msra.mxu0 0.0
    %428 = vmatprep.mubr.f32.mxu0 0.0
    %429 = vmatmul.mubr.f32.gmra.mxu0 %v362
    %v430 = vpop.f32.mrf.mxu0
    %v431 = vadd.f32 0.0, %v430
    %v432 = vpop.f32.mrf.mxu0
    %v433 = vadd.f32 0.0, %v432
    %434 = vdwg.mxu0
    %v435 = vadd.f32 %v321, %v431
    %v436 = vxor.u32 %v435, 2147483648
    %v437 = vmul.f32 %v436, 1.442695
    %v438 = vpow.pop %v437
    %v439 = vadd.f32 %v438, 1.0
    %v440 = vrcp.pop %v439
    %v441 = vmul.f32 1.0, %v440
    %v443 = vlaneseq
    %v444 = vshrl.u32 %v443, 7
    %v445 = vsub.s32 0, %v444
    %v446 = vrot.slane %v359, %v445
    %v448 = vadd.f32 %v433, %v446
    %v449 = vmul.f32 %v441, %v448
    %v450 = vadd.f32 %v323, %v449
    %v451 = vtanh.pop %v450
    %v452 = vsub.f32 1.0, %v441
    %454 = vrot.lane.b32.xlu0 %v451, 64
    %v455 = vpop.permute.xlu0 %454
    %v457 = vmul.f32 %v452, %v455
    %458 = vrot.lane.b32.xlu0 %v360, 64
    %v459 = vpop.permute.xlu0 %458
    %v461 = vmul.f32 %v441, %v459
    %v462 = vadd.f32 %v457, %v461
    %464 = vrot.lane.b32.xlu0 %v462, 64
    %v465 = vpop.permute.xlu0 %464
    %vm467 = vcmask 519168
    %468 = vst.msk [vmem:[#allocation11] sm:$0xf] %vm467, %v465
    %v469 = vsel %vm241, %v465, 0
    %471 = vmatprep.subr.mxu0 0.0
    %472 = vmatpush1.msra.mxu0 0.0
    %473 = vmatprep.subr.mxu0 0.0
    %474 = vmatpush1.msra.mxu0 0.0
    %475 = vmatprep.subr.mxu0 0.0
    %476 = vmatpush1.msra.mxu0 0.0
    %477 = vmatprep.subr.mxu0 0.0
    %478 = vmatpush1.msra.mxu0 0.0
    %479 = vmatprep.subr.mxu0 0.0
    %480 = vmatpush1.msra.mxu0 0.0
    %481 = vmatprep.subr.mxu0 0.0
    %482 = vmatpush1.msra.mxu0 0.0
    %483 = vmatprep.subr.mxu0 0.0
    %484 = vmatpush1.msra.mxu0 0.0
    %485 = vmatprep.subr.mxu0 0.0
    %486 = vmatpush1.msra.mxu0 0.0
    %487 = vmatprep.subr.mxu0 %v358
    %488 = vmatpush1.msra.mxu0 %v357
    %489 = vmatprep.subr.mxu0 %v356
    %490 = vmatpush1.msra.mxu0 %v355
    %491 = vmatprep.subr.mxu0 %v354
    %492 = vmatpush1.msra.mxu0 %v353
    %493 = vmatprep.subr.mxu0 %v352
    %494 = vmatpush1.msra.mxu0 %v351
    %495 = vmatprep.subr.mxu0 %v350
    %496 = vmatpush1.msra.mxu0 %v349
    %497 = vmatprep.subr.mxu0 %v348
    %498 = vmatpush1.msra.mxu0 %v347
    %499 = vmatprep.subr.mxu0 %v346
    %500 = vmatpush1.msra.mxu0 %v345
    %501 = vmatprep.subr.mxu0 %v344
    %502 = vmatpush1.msra.mxu0 %v343
    %503 = vmatprep.subr.mxu0 0.0
    %504 = vmatpush2.msra.mxu0 0.0
    %505 = vmatprep.subr.mxu0 0.0
    %506 = vmatpush2.msra.mxu0 0.0
    %507 = vmatprep.subr.mxu0 0.0
    %508 = vmatpush2.msra.mxu0 0.0
    %509 = vmatprep.subr.mxu0 0.0
    %510 = vmatpush2.msra.mxu0 0.0
    %511 = vmatprep.subr.mxu0 0.0
    %512 = vmatpush2.msra.mxu0 0.0
    %513 = vmatprep.subr.mxu0 0.0
    %514 = vmatpush2.msra.mxu0 0.0
    %515 = vmatprep.subr.mxu0 0.0
    %516 = vmatpush2.msra.mxu0 0.0
    %517 = vmatprep.subr.mxu0 0.0
    %518 = vmatpush2.msra.mxu0 0.0
    %519 = vmatprep.subr.mxu0 0.0
    %520 = vmatpush2.msra.mxu0 0.0
    %521 = vmatprep.subr.mxu0 0.0
    %522 = vmatpush2.msra.mxu0 0.0
    %523 = vmatprep.subr.mxu0 0.0
    %524 = vmatpush2.msra.mxu0 0.0
    %525 = vmatprep.subr.mxu0 0.0
    %526 = vmatpush2.msra.mxu0 0.0
    %527 = vmatprep.subr.mxu0 0.0
    %528 = vmatpush2.msra.mxu0 0.0
    %529 = vmatprep.subr.mxu0 0.0
    %530 = vmatpush2.msra.mxu0 0.0
    %531 = vmatprep.subr.mxu0 0.0
    %532 = vmatpush2.msra.mxu0 0.0
    %533 = vmatprep.subr.mxu0 0.0
    %534 = vmatpush2.msra.mxu0 0.0
    %535 = vmatprep.mubr.f32.mxu0 0.0
    %536 = vmatmul.mubr.f32.gmra.mxu0 %v469
    %v537 = vpop.f32.mrf.mxu0
    %v538 = vadd.f32 0.0, %v537
    %v539 = vpop.f32.mrf.mxu0
    %v540 = vadd.f32 0.0, %v539
    %541 = vdwg.mxu0
    %v543 = vrot.slane %v538, 4
    %v545 = vadd.f32 %v321, %v543
    %v546 = vxor.u32 %v545, 2147483648
    %v547 = vmul.f32 %v546, 1.442695
    %v548 = vpow.pop %v547
    %v549 = vadd.f32 %v548, 1.0
    %v550 = vrcp.pop %v549
    %v551 = vmul.f32 1.0, %v550
    %v552 = vadd.f32 %v540, %v446
    %v554 = vrot.slane %v552, 4
    %v556 = vmul.f32 %v551, %v554
    %v557 = vadd.f32 %v323, %v556
    %v558 = vtanh.pop %v557
    %v559 = vsub.f32 1.0, %v551
    %561 = vrot.lane.b32.xlu0 %v558, 64
    %v562 = vpop.permute.xlu0 %561
    %v564 = vmul.f32 %v559, %v562
    %v565 = vrot.slane %v462, 4
    %v567 = vmul.f32 %v551, %v565
    %v568 = vadd.f32 %v564, %v567
    %570 = vrot.lane.b32.xlu0 %v568, 64
    %v571 = vpop.permute.xlu0 %570
    %s573 = scalar_lea.vmem [#allocation11], 4
    %vm574 = vcmask 523268
    %575 = vst.msk [vmem:[%s573 - $0x4] sm:$0xf0] %vm574, %v571
    %v576 = vrot.slane %v568, 4
    %577 = vrot.lane.b32.xlu0 %v576, 64
    %v578 = vpop.permute.xlu0 %577
    %v579 = vsel %vm241, %v578, 0
    %581 = vmatprep.subr.mxu0 0.0
    %582 = vmatpush1.msra.mxu0 0.0
    %583 = vmatprep.subr.mxu0 0.0
    %584 = vmatpush1.msra.mxu0 0.0
    %585 = vmatprep.subr.mxu0 0.0
    %586 = vmatpush1.msra.mxu0 0.0
    %587 = vmatprep.subr.mxu0 0.0
    %588 = vmatpush1.msra.mxu0 0.0
    %589 = vmatprep.subr.mxu0 0.0
    %590 = vmatpush1.msra.mxu0 0.0
    %591 = vmatprep.subr.mxu0 0.0
    %592 = vmatpush1.msra.mxu0 0.0
    %593 = vmatprep.subr.mxu0 0.0
    %594 = vmatpush1.msra.mxu0 0.0
    %595 = vmatprep.subr.mxu0 0.0
    %596 = vmatpush1.msra.mxu0 0.0
    %597 = vmatprep.subr.mxu0 %v358
    %598 = vmatpush1.msra.mxu0 %v357
    %599 = vmatprep.subr.mxu0 %v356
    %600 = vmatpush1.msra.mxu0 %v355
    %601 = vmatprep.subr.mxu0 %v354
    %602 = vmatpush1.msra.mxu0 %v353
    %603 = vmatprep.subr.mxu0 %v352
    %604 = vmatpush1.msra.mxu0 %v351
    %605 = vmatprep.subr.mxu0 %v350
    %606 = vmatpush1.msra.mxu0 %v349
    %607 = vmatprep.subr.mxu0 %v348
    %608 = vmatpush1.msra.mxu0 %v347
    %609 = vmatprep.subr.mxu0 %v346
    %610 = vmatpush1.msra.mxu0 %v345
    %611 = vmatprep.subr.mxu0 %v344
    %612 = vmatpush1.msra.mxu0 %v343
    %613 = vmatprep.subr.mxu0 0.0
    %614 = vmatpush2.msra.mxu0 0.0
    %615 = vmatprep.subr.mxu0 0.0
    %616 = vmatpush2.msra.mxu0 0.0
    %617 = vmatprep.subr.mxu0 0.0
    %618 = vmatpush2.msra.mxu0 0.0
    %619 = vmatprep.subr.mxu0 0.0
    %620 = vmatpush2.msra.mxu0 0.0
    %621 = vmatprep.subr.mxu0 0.0
    %622 = vmatpush2.msra.mxu0 0.0
    %623 = vmatprep.subr.mxu0 0.0
    %624 = vmatpush2.msra.mxu0 0.0
    %625 = vmatprep.subr.mxu0 0.0
    %626 = vmatpush2.msra.mxu0 0.0
    %627 = vmatprep.subr.mxu0 0.0
    %628 = vmatpush2.msra.mxu0 0.0
    %629 = vmatprep.subr.mxu0 0.0
    %630 = vmatpush2.msra.mxu0 0.0
    %631 = vmatprep.subr.mxu0 0.0
    %632 = vmatpush2.msra.mxu0 0.0
    %633 = vmatprep.subr.mxu0 0.0
    %634 = vmatpush2.msra.mxu0 0.0
    %635 = vmatprep.subr.mxu0 0.0
    %636 = vmatpush2.msra.mxu0 0.0
    %637 = vmatprep.subr.mxu0 0.0
    %638 = vmatpush2.msra.mxu0 0.0
    %639 = vmatprep.subr.mxu0 0.0
    %640 = vmatpush2.msra.mxu0 0.0
    %641 = vmatprep.subr.mxu0 0.0
    %642 = vmatpush2.msra.mxu0 0.0
    %643 = vmatprep.subr.mxu0 0.0
    %644 = vmatpush2.msra.mxu0 0.0
    %645 = vmatprep.mubr.f32.mxu0 0.0
    %646 = vmatmul.mubr.f32.gmra.mxu0 %v579
    %v647 = vpop.f32.mrf.mxu0
    %v648 = vadd.f32 0.0, %v647
    %v649 = vpop.f32.mrf.mxu0
    %v650 = vadd.f32 0.0, %v649
    %651 = vdwg.mxu0
    %v652 = vadd.f32 %v327, %v648
    %v653 = vxor.u32 %v652, 2147483648
    %v654 = vmul.f32 %v653, 1.442695
    %v655 = vpow.pop %v654
    %v656 = vadd.f32 %v655, 1.0
    %v657 = vrcp.pop %v656
    %v658 = vmul.f32 1.0, %v657
    %v659 = vadd.f32 %v650, %v446
    %v660 = vmul.f32 %v658, %v659
    %v661 = vadd.f32 %v329, %v660
    %v662 = vtanh.pop %v661
    %v663 = vsub.f32 1.0, %v658
    %665 = vrot.lane.b32.xlu0 %v662, 64
    %v666 = vpop.permute.xlu0 %665
    %v668 = vmul.f32 %v663, %v666
    %v670 = vmul.f32 %v658, %v576
    %v671 = vadd.f32 %v668, %v670
    %673 = vrot.lane.b32.xlu0 %v671, 64
    %v674 = vpop.permute.xlu0 %673
    %s676 = scalar_lea.vmem [#allocation11], 8
    %677 = vst.msk [vmem:[%s676] sm:$0xf] %vm467, %v674
    %v678 = vsel %vm241, %v674, 0
    %680 = vmatprep.subr.mxu0 0.0
    %681 = vmatpush1.msra.mxu0 0.0
    %682 = vmatprep.subr.mxu0 0.0
    %683 = vmatpush1.msra.mxu0 0.0
    %684 = vmatprep.subr.mxu0 0.0
    %685 = vmatpush1.msra.mxu0 0.0
    %686 = vmatprep.subr.mxu0 0.0
    %687 = vmatpush1.msra.mxu0 0.0
    %688 = vmatprep.subr.mxu0 0.0
    %689 = vmatpush1.msra.mxu0 0.0
    %690 = vmatprep.subr.mxu0 0.0
    %691 = vmatpush1.msra.mxu0 0.0
    %692 = vmatprep.subr.mxu0 0.0
    %693 = vmatpush1.msra.mxu0 0.0
    %694 = vmatprep.subr.mxu0 0.0
    %695 = vmatpush1.msra.mxu0 0.0
    %696 = vmatprep.subr.mxu0 %v358
    %697 = vmatpush1.msra.mxu0 %v357
    %698 = vmatprep.subr.mxu0 %v356
    %699 = vmatpush1.msra.mxu0 %v355
    %700 = vmatprep.subr.mxu0 %v354
    %701 = vmatpush1.msra.mxu0 %v353
    %702 = vmatprep.subr.mxu0 %v352
    %703 = vmatpush1.msra.mxu0 %v351
    %704 = vmatprep.subr.mxu0 %v350
    %705 = vmatpush1.msra.mxu0 %v349
    %706 = vmatprep.subr.mxu0 %v348
    %707 = vmatpush1.msra.mxu0 %v347
    %708 = vmatprep.subr.mxu0 %v346
    %709 = vmatpush1.msra.mxu0 %v345
    %710 = vmatprep.subr.mxu0 %v344
    %711 = vmatpush1.msra.mxu0 %v343
    %712 = vmatprep.subr.mxu0 0.0
    %713 = vmatpush2.msra.mxu0 0.0
    %714 = vmatprep.subr.mxu0 0.0
    %715 = vmatpush2.msra.mxu0 0.0
    %716 = vmatprep.subr.mxu0 0.0
    %717 = vmatpush2.msra.mxu0 0.0
    %718 = vmatprep.subr.mxu0 0.0
    %719 = vmatpush2.msra.mxu0 0.0
    %720 = vmatprep.subr.mxu0 0.0
    %721 = vmatpush2.msra.mxu0 0.0
    %722 = vmatprep.subr.mxu0 0.0
    %723 = vmatpush2.msra.mxu0 0.0
    %724 = vmatprep.subr.mxu0 0.0
    %725 = vmatpush2.msra.mxu0 0.0
    %726 = vmatprep.subr.mxu0 0.0
    %727 = vmatpush2.msra.mxu0 0.0
    %728 = vmatprep.subr.mxu0 0.0
    %729 = vmatpush2.msra.mxu0 0.0
    %730 = vmatprep.subr.mxu0 0.0
    %731 = vmatpush2.msra.mxu0 0.0
    %732 = vmatprep.subr.mxu0 0.0
    %733 = vmatpush2.msra.mxu0 0.0
    %734 = vmatprep.subr.mxu0 0.0
    %735 = vmatpush2.msra.mxu0 0.0
    %736 = vmatprep.subr.mxu0 0.0
    %737 = vmatpush2.msra.mxu0 0.0
    %738 = vmatprep.subr.mxu0 0.0
    %739 = vmatpush2.msra.mxu0 0.0
    %740 = vmatprep.subr.mxu0 0.0
    %741 = vmatpush2.msra.mxu0 0.0
    %742 = vmatprep.subr.mxu0 0.0
    %743 = vmatpush2.msra.mxu0 0.0
    %744 = vmatprep.mubr.f32.mxu0 0.0
    %745 = vmatmul.mubr.f32.gmra.mxu0 %v678
    %v746 = vpop.f32.mrf.mxu0
    %v747 = vadd.f32 0.0, %v746
    %v748 = vpop.f32.mrf.mxu0
    %v749 = vadd.f32 0.0, %v748
    %750 = vdwg.mxu0
    %v752 = vrot.slane %v747, 4
    %v754 = vadd.f32 %v327, %v752
    %v755 = vxor.u32 %v754, 2147483648
    %v756 = vmul.f32 %v755, 1.442695
    %v757 = vpow.pop %v756
    %v758 = vadd.f32 %v757, 1.0
    %v759 = vrcp.pop %v758
    %v760 = vmul.f32 1.0, %v759
    %v761 = vadd.f32 %v749, %v446
    %v763 = vrot.slane %v761, 4
    %v765 = vmul.f32 %v760, %v763
    %v766 = vadd.f32 %v329, %v765
    %v767 = vtanh.pop %v766
    %v768 = vsub.f32 1.0, %v760
    %770 = vrot.lane.b32.xlu0 %v767, 64
    %v771 = vpop.permute.xlu0 %770
    %v773 = vmul.f32 %v768, %v771
    %v774 = vrot.slane %v671, 4
    %v776 = vmul.f32 %v760, %v774
    %v777 = vadd.f32 %v773, %v776
    %779 = vrot.lane.b32.xlu0 %v777, 64
    %v780 = vpop.permute.xlu0 %779
    %s782 = scalar_lea.vmem [#allocation11], 12
    %783 = vst.msk [vmem:[%s782 - $0x4] sm:$0xf0] %vm574, %v780
    %v784 = vrot.slane %v777, 4
    %785 = vrot.lane.b32.xlu0 %v784, 64
    %v786 = vpop.permute.xlu0 %785
    %v787 = vsel %vm241, %v786, 0
    %789 = vmatprep.subr.mxu0 0.0
    %790 = vmatpush1.msra.mxu0 0.0
    %791 = vmatprep.subr.mxu0 0.0
    %792 = vmatpush1.msra.mxu0 0.0
    %793 = vmatprep.subr.mxu0 0.0
    %794 = vmatpush1.msra.mxu0 0.0
    %795 = vmatprep.subr.mxu0 0.0
    %796 = vmatpush1.msra.mxu0 0.0
    %797 = vmatprep.subr.mxu0 0.0
    %798 = vmatpush1.msra.mxu0 0.0
    %799 = vmatprep.subr.mxu0 0.0
    %800 = vmatpush1.msra.mxu0 0.0
    %801 = vmatprep.subr.mxu0 0.0
    %802 = vmatpush1.msra.mxu0 0.0
    %803 = vmatprep.subr.mxu0 0.0
    %804 = vmatpush1.msra.mxu0 0.0
    %805 = vmatprep.subr.mxu0 %v358
    %806 = vmatpush1.msra.mxu0 %v357
    %807 = vmatprep.subr.mxu0 %v356
    %808 = vmatpush1.msra.mxu0 %v355
    %809 = vmatprep.subr.mxu0 %v354
    %810 = vmatpush1.msra.mxu0 %v353
    %811 = vmatprep.subr.mxu0 %v352
    %812 = vmatpush1.msra.mxu0 %v351
    %813 = vmatprep.subr.mxu0 %v350
    %814 = vmatpush1.msra.mxu0 %v349
    %815 = vmatprep.subr.mxu0 %v348
    %816 = vmatpush1.msra.mxu0 %v347
    %817 = vmatprep.subr.mxu0 %v346
    %818 = vmatpush1.msra.mxu0 %v345
    %819 = vmatprep.subr.mxu0 %v344
    %820 = vmatpush1.msra.mxu0 %v343
    %821 = vmatprep.subr.mxu0 0.0
    %822 = vmatpush2.msra.mxu0 0.0
    %823 = vmatprep.subr.mxu0 0.0
    %824 = vmatpush2.msra.mxu0 0.0
    %825 = vmatprep.subr.mxu0 0.0
    %826 = vmatpush2.msra.mxu0 0.0
    %827 = vmatprep.subr.mxu0 0.0
    %828 = vmatpush2.msra.mxu0 0.0
    %829 = vmatprep.subr.mxu0 0.0
    %830 = vmatpush2.msra.mxu0 0.0
    %831 = vmatprep.subr.mxu0 0.0
    %832 = vmatpush2.msra.mxu0 0.0
    %833 = vmatprep.subr.mxu0 0.0
    %834 = vmatpush2.msra.mxu0 0.0
    %835 = vmatprep.subr.mxu0 0.0
    %836 = vmatpush2.msra.mxu0 0.0
    %837 = vmatprep.subr.mxu0 0.0
    %838 = vmatpush2.msra.mxu0 0.0
    %839 = vmatprep.subr.mxu0 0.0
    %840 = vmatpush2.msra.mxu0 0.0
    %841 = vmatprep.subr.mxu0 0.0
    %842 = vmatpush2.msra.mxu0 0.0
    %843 = vmatprep.subr.mxu0 0.0
    %844 = vmatpush2.msra.mxu0 0.0
    %845 = vmatprep.subr.mxu0 0.0
    %846 = vmatpush2.msra.mxu0 0.0
    %847 = vmatprep.subr.mxu0 0.0
    %848 = vmatpush2.msra.mxu0 0.0
    %849 = vmatprep.subr.mxu0 0.0
    %850 = vmatpush2.msra.mxu0 0.0
    %851 = vmatprep.subr.mxu0 0.0
    %852 = vmatpush2.msra.mxu0 0.0
    %853 = vmatprep.mubr.f32.mxu0 0.0
    %854 = vmatmul.mubr.f32.gmra.mxu0 %v787
    %v855 = vpop.f32.mrf.mxu0
    %v856 = vadd.f32 0.0, %v855
    %v857 = vpop.f32.mrf.mxu0
    %v858 = vadd.f32 0.0, %v857
    %859 = vdwg.mxu0
    %v860 = vadd.f32 %v333, %v856
    %v861 = vxor.u32 %v860, 2147483648
    %v862 = vmul.f32 %v861, 1.442695
    %v863 = vpow.pop %v862
    %v864 = vadd.f32 %v863, 1.0
    %v865 = vrcp.pop %v864
    %v866 = vmul.f32 1.0, %v865
    %v867 = vadd.f32 %v858, %v446
    %v868 = vmul.f32 %v866, %v867
    %v869 = vadd.f32 %v335, %v868
    %v870 = vtanh.pop %v869
    %v871 = vsub.f32 1.0, %v866
    %873 = vrot.lane.b32.xlu0 %v870, 64
    %v874 = vpop.permute.xlu0 %873
    %v876 = vmul.f32 %v871, %v874
    %v878 = vmul.f32 %v866, %v784
    %v879 = vadd.f32 %v876, %v878
    %881 = vrot.lane.b32.xlu0 %v879, 64
    %v882 = vpop.permute.xlu0 %881
    %s884 = scalar_lea.vmem [#allocation11], 16
    %885 = vst.msk [vmem:[%s884] sm:$0xf] %vm467, %v882
    %v886 = vsel %vm241, %v882, 0
    %888 = vmatprep.subr.mxu0 0.0
    %889 = vmatpush1.msra.mxu0 0.0
    %890 = vmatprep.subr.mxu0 0.0
    %891 = vmatpush1.msra.mxu0 0.0
    %892 = vmatprep.subr.mxu0 0.0
    %893 = vmatpush1.msra.mxu0 0.0
    %894 = vmatprep.subr.mxu0 0.0
    %895 = vmatpush1.msra.mxu0 0.0
    %896 = vmatprep.subr.mxu0 0.0
    %897 = vmatpush1.msra.mxu0 0.0
    %898 = vmatprep.subr.mxu0 0.0
    %899 = vmatpush1.msra.mxu0 0.0
    %900 = vmatprep.subr.mxu0 0.0
    %901 = vmatpush1.msra.mxu0 0.0
    %902 = vmatprep.subr.mxu0 0.0
    %903 = vmatpush1.msra.mxu0 0.0
    %904 = vmatprep.subr.mxu0 %v358
    %905 = vmatpush1.msra.mxu0 %v357
    %906 = vmatprep.subr.mxu0 %v356
    %907 = vmatpush1.msra.mxu0 %v355
    %908 = vmatprep.subr.mxu0 %v354
    %909 = vmatpush1.msra.mxu0 %v353
    %910 = vmatprep.subr.mxu0 %v352
    %911 = vmatpush1.msra.mxu0 %v351
    %912 = vmatprep.subr.mxu0 %v350
    %913 = vmatpush1.msra.mxu0 %v349
    %914 = vmatprep.subr.mxu0 %v348
    %915 = vmatpush1.msra.mxu0 %v347
    %916 = vmatprep.subr.mxu0 %v346
    %917 = vmatpush1.msra.mxu0 %v345
    %918 = vmatprep.subr.mxu0 %v344
    %919 = vmatpush1.msra.mxu0 %v343
    %920 = vmatprep.subr.mxu0 0.0
    %921 = vmatpush2.msra.mxu0 0.0
    %922 = vmatprep.subr.mxu0 0.0
    %923 = vmatpush2.msra.mxu0 0.0
    %924 = vmatprep.subr.mxu0 0.0
    %925 = vmatpush2.msra.mxu0 0.0
    %926 = vmatprep.subr.mxu0 0.0
    %927 = vmatpush2.msra.mxu0 0.0
    %928 = vmatprep.subr.mxu0 0.0
    %929 = vmatpush2.msra.mxu0 0.0
    %930 = vmatprep.subr.mxu0 0.0
    %931 = vmatpush2.msra.mxu0 0.0
    %932 = vmatprep.subr.mxu0 0.0
    %933 = vmatpush2.msra.mxu0 0.0
    %934 = vmatprep.subr.mxu0 0.0
    %935 = vmatpush2.msra.mxu0 0.0
    %936 = vmatprep.subr.mxu0 0.0
    %937 = vmatpush2.msra.mxu0 0.0
    %938 = vmatprep.subr.mxu0 0.0
    %939 = vmatpush2.msra.mxu0 0.0
    %940 = vmatprep.subr.mxu0 0.0
    %941 = vmatpush2.msra.mxu0 0.0
    %942 = vmatprep.subr.mxu0 0.0
    %943 = vmatpush2.msra.mxu0 0.0
    %944 = vmatprep.subr.mxu0 0.0
    %945 = vmatpush2.msra.mxu0 0.0
    %946 = vmatprep.subr.mxu0 0.0
    %947 = vmatpush2.msra.mxu0 0.0
    %948 = vmatprep.subr.mxu0 0.0
    %949 = vmatpush2.msra.mxu0 0.0
    %950 = vmatprep.subr.mxu0 0.0
    %951 = vmatpush2.msra.mxu0 0.0
    %952 = vmatprep.mubr.f32.mxu0 0.0
    %953 = vmatmul.mubr.f32.gmra.mxu0 %v886
    %v954 = vpop.f32.mrf.mxu0
    %v955 = vadd.f32 0.0, %v954
    %v956 = vpop.f32.mrf.mxu0
    %v957 = vadd.f32 0.0, %v956
    %958 = vdwg.mxu0
    %v960 = vrot.slane %v955, 4
    %v962 = vadd.f32 %v333, %v960
    %v963 = vxor.u32 %v962, 2147483648
    %v964 = vmul.f32 %v963, 1.442695
    %v965 = vpow.pop %v964
    %v966 = vadd.f32 %v965, 1.0
    %v967 = vrcp.pop %v966
    %v968 = vmul.f32 1.0, %v967
    %v969 = vadd.f32 %v957, %v446
    %v971 = vrot.slane %v969, 4
    %v973 = vmul.f32 %v968, %v971
    %v974 = vadd.f32 %v335, %v973
    %v975 = vtanh.pop %v974
    %v976 = vsub.f32 1.0, %v968
    %978 = vrot.lane.b32.xlu0 %v975, 64
    %v979 = vpop.permute.xlu0 %978
    %v981 = vmul.f32 %v976, %v979
    %v982 = vrot.slane %v879, 4
    %v984 = vmul.f32 %v968, %v982
    %v985 = vadd.f32 %v981, %v984
    %987 = vrot.lane.b32.xlu0 %v985, 64
    %v988 = vpop.permute.xlu0 %987
    %s990 = scalar_lea.vmem [#allocation11], 20
    %991 = vst.msk [vmem:[%s990 - $0x4] sm:$0xf0] %vm574, %v988
    %v992 = vrot.slane %v985, 4
    %993 = vrot.lane.b32.xlu0 %v992, 64
    %v994 = vpop.permute.xlu0 %993
    %v995 = vsel %vm241, %v994, 0
    %997 = vmatprep.subr.mxu0 0.0
    %998 = vmatpush1.msra.mxu0 0.0
    %999 = vmatprep.subr.mxu0 0.0
    %1000 = vmatpush1.msra.mxu0 0.0
    %1001 = vmatprep.subr.mxu0 0.0
    %1002 = vmatpush1.msra.mxu0 0.0
    %1003 = vmatprep.subr.mxu0 0.0
    %1004 = vmatpush1.msra.mxu0 0.0
    %1005 = vmatprep.subr.mxu0 0.0
    %1006 = vmatpush1.msra.mxu0 0.0
    %1007 = vmatprep.subr.mxu0 0.0
    %1008 = vmatpush1.msra.mxu0 0.0
    %1009 = vmatprep.subr.mxu0 0.0
    %1010 = vmatpush1.msra.mxu0 0.0
    %1011 = vmatprep.subr.mxu0 0.0
    %1012 = vmatpush1.msra.mxu0 0.0
    %1013 = vmatprep.subr.mxu0 %v358
    %1014 = vmatpush1.msra.mxu0 %v357
    %1015 = vmatprep.subr.mxu0 %v356
    %1016 = vmatpush1.msra.mxu0 %v355
    %1017 = vmatprep.subr.mxu0 %v354
    %1018 = vmatpush1.msra.mxu0 %v353
    %1019 = vmatprep.subr.mxu0 %v352
    %1020 = vmatpush1.msra.mxu0 %v351
    %1021 = vmatprep.subr.mxu0 %v350
    %1022 = vmatpush1.msra.mxu0 %v349
    %1023 = vmatprep.subr.mxu0 %v348
    %1024 = vmatpush1.msra.mxu0 %v347
    %1025 = vmatprep.subr.mxu0 %v346
    %1026 = vmatpush1.msra.mxu0 %v345
    %1027 = vmatprep.subr.mxu0 %v344
    %1028 = vmatpush1.msra.mxu0 %v343
    %1029 = vmatprep.subr.mxu0 0.0
    %1030 = vmatpush2.msra.mxu0 0.0
    %1031 = vmatprep.subr.mxu0 0.0
    %1032 = vmatpush2.msra.mxu0 0.0
    %1033 = vmatprep.subr.mxu0 0.0
    %1034 = vmatpush2.msra.mxu0 0.0
    %1035 = vmatprep.subr.mxu0 0.0
    %1036 = vmatpush2.msra.mxu0 0.0
    %1037 = vmatprep.subr.mxu0 0.0
    %1038 = vmatpush2.msra.mxu0 0.0
    %1039 = vmatprep.subr.mxu0 0.0
    %1040 = vmatpush2.msra.mxu0 0.0
    %1041 = vmatprep.subr.mxu0 0.0
    %1042 = vmatpush2.msra.mxu0 0.0
    %1043 = vmatprep.subr.mxu0 0.0
    %1044 = vmatpush2.msra.mxu0 0.0
    %1045 = vmatprep.subr.mxu0 0.0
    %1046 = vmatpush2.msra.mxu0 0.0
    %1047 = vmatprep.subr.mxu0 0.0
    %1048 = vmatpush2.msra.mxu0 0.0
    %1049 = vmatprep.subr.mxu0 0.0
    %1050 = vmatpush2.msra.mxu0 0.0
    %1051 = vmatprep.subr.mxu0 0.0
    %1052 = vmatpush2.msra.mxu0 0.0
    %1053 = vmatprep.subr.mxu0 0.0
    %1054 = vmatpush2.msra.mxu0 0.0
    %1055 = vmatprep.subr.mxu0 0.0
    %1056 = vmatpush2.msra.mxu0 0.0
    %1057 = vmatprep.subr.mxu0 0.0
    %1058 = vmatpush2.msra.mxu0 0.0
    %1059 = vmatprep.subr.mxu0 0.0
    %1060 = vmatpush2.msra.mxu0 0.0
    %1061 = vmatprep.mubr.f32.mxu0 0.0
    %1062 = vmatmul.mubr.f32.gmra.mxu0 %v995
    %v1063 = vpop.f32.mrf.mxu0
    %v1064 = vadd.f32 0.0, %v1063
    %v1065 = vpop.f32.mrf.mxu0
    %v1066 = vadd.f32 0.0, %v1065
    %1067 = vdwg.mxu0
    %v1068 = vadd.f32 %v339, %v1064
    %v1069 = vxor.u32 %v1068, 2147483648
    %v1070 = vmul.f32 %v1069, 1.442695
    %v1071 = vpow.pop %v1070
    %v1072 = vadd.f32 %v1071, 1.0
    %v1073 = vrcp.pop %v1072
    %v1074 = vmul.f32 1.0, %v1073
    %v1075 = vadd.f32 %v1066, %v446
    %v1076 = vmul.f32 %v1074, %v1075
    %v1077 = vadd.f32 %v341, %v1076
    %v1078 = vtanh.pop %v1077
    %v1079 = vsub.f32 1.0, %v1074
    %1081 = vrot.lane.b32.xlu0 %v1078, 64
    %v1082 = vpop.permute.xlu0 %1081
    %v1084 = vmul.f32 %v1079, %v1082
    %v1086 = vmul.f32 %v1074, %v992
    %v1087 = vadd.f32 %v1084, %v1086
    %1089 = vrot.lane.b32.xlu0 %v1087, 64
    %v1090 = vpop.permute.xlu0 %1089
    %s1092 = scalar_lea.vmem [#allocation11], 24
    %1093 = vst.msk [vmem:[%s1092] sm:$0xf] %vm467, %v1090
    %v1094 = vsel %vm241, %v1090, 0
    %1096 = vmatprep.subr.mxu0 0.0
    %1097 = vmatpush1.msra.mxu0 0.0
    %1098 = vmatprep.subr.mxu0 0.0
    %1099 = vmatpush1.msra.mxu0 0.0
    %1100 = vmatprep.subr.mxu0 0.0
    %1101 = vmatpush1.msra.mxu0 0.0
    %1102 = vmatprep.subr.mxu0 0.0
    %1103 = vmatpush1.msra.mxu0 0.0
    %1104 = vmatprep.subr.mxu0 0.0
    %1105 = vmatpush1.msra.mxu0 0.0
    %1106 = vmatprep.subr.mxu0 0.0
    %1107 = vmatpush1.msra.mxu0 0.0
    %1108 = vmatprep.subr.mxu0 0.0
    %1109 = vmatpush1.msra.mxu0 0.0
    %1110 = vmatprep.subr.mxu0 0.0
    %1111 = vmatpush1.msra.mxu0 0.0
    %1112 = vmatprep.subr.mxu0 %v358
    %1113 = vmatpush1.msra.mxu0 %v357
    %1114 = vmatprep.subr.mxu0 %v356
    %1115 = vmatpush1.msra.mxu0 %v355
    %1116 = vmatprep.subr.mxu0 %v354
    %1117 = vmatpush1.msra.mxu0 %v353
    %1118 = vmatprep.subr.mxu0 %v352
    %1119 = vmatpush1.msra.mxu0 %v351
    %1120 = vmatprep.subr.mxu0 %v350
    %1121 = vmatpush1.msra.mxu0 %v349
    %1122 = vmatprep.subr.mxu0 %v348
    %1123 = vmatpush1.msra.mxu0 %v347
    %1124 = vmatprep.subr.mxu0 %v346
    %1125 = vmatpush1.msra.mxu0 %v345
    %1126 = vmatprep.subr.mxu0 %v344
    %1127 = vmatpush1.msra.mxu0 %v343
    %1128 = vmatprep.subr.mxu0 0.0
    %1129 = vmatpush2.msra.mxu0 0.0
    %1130 = vmatprep.subr.mxu0 0.0
    %1131 = vmatpush2.msra.mxu0 0.0
    %1132 = vmatprep.subr.mxu0 0.0
    %1133 = vmatpush2.msra.mxu0 0.0
    %1134 = vmatprep.subr.mxu0 0.0
    %1135 = vmatpush2.msra.mxu0 0.0
    %1136 = vmatprep.subr.mxu0 0.0
    %1137 = vmatpush2.msra.mxu0 0.0
    %1138 = vmatprep.subr.mxu0 0.0
    %1139 = vmatpush2.msra.mxu0 0.0
    %1140 = vmatprep.subr.mxu0 0.0
    %1141 = vmatpush2.msra.mxu0 0.0
    %1142 = vmatprep.subr.mxu0 0.0
    %1143 = vmatpush2.msra.mxu0 0.0
    %1144 = vmatprep.subr.mxu0 0.0
    %1145 = vmatpush2.msra.mxu0 0.0
    %1146 = vmatprep.subr.mxu0 0.0
    %1147 = vmatpush2.msra.mxu0 0.0
    %1148 = vmatprep.subr.mxu0 0.0
    %1149 = vmatpush2.msra.mxu0 0.0
    %1150 = vmatprep.subr.mxu0 0.0
    %1151 = vmatpush2.msra.mxu0 0.0
    %1152 = vmatprep.subr.mxu0 0.0
    %1153 = vmatpush2.msra.mxu0 0.0
    %1154 = vmatprep.subr.mxu0 0.0
    %1155 = vmatpush2.msra.mxu0 0.0
    %1156 = vmatprep.subr.mxu0 0.0
    %1157 = vmatpush2.msra.mxu0 0.0
    %1158 = vmatprep.subr.mxu0 0.0
    %1159 = vmatpush2.msra.mxu0 0.0
    %1160 = vmatprep.mubr.f32.mxu0 0.0
    %1161 = vmatmul.mubr.f32.gmra.mxu0 %v1094
    %v1162 = vpop.f32.mrf.mxu0
    %v1163 = vadd.f32 0.0, %v1162
    %v1164 = vpop.f32.mrf.mxu0
    %v1165 = vadd.f32 0.0, %v1164
    %1166 = vdwg.mxu0
    %v1168 = vrot.slane %v1163, 4
    %v1170 = vadd.f32 %v339, %v1168
    %v1171 = vxor.u32 %v1170, 2147483648
    %v1172 = vmul.f32 %v1171, 1.442695
    %v1173 = vpow.pop %v1172
    %v1174 = vadd.f32 %v1173, 1.0
    %v1175 = vrcp.pop %v1174
    %v1176 = vmul.f32 1.0, %v1175
    %v1177 = vadd.f32 %v1165, %v446
    %v1179 = vrot.slane %v1177, 4
    %v1181 = vmul.f32 %v1176, %v1179
    %v1182 = vadd.f32 %v341, %v1181
    %v1183 = vtanh.pop %v1182
    %v1184 = vsub.f32 1.0, %v1176
    %1186 = vrot.lane.b32.xlu0 %v1183, 64
    %v1187 = vpop.permute.xlu0 %1186
    %v1189 = vmul.f32 %v1184, %v1187
    %v1190 = vrot.slane %v1087, 4
    %v1192 = vmul.f32 %v1176, %v1190
    %v1193 = vadd.f32 %v1189, %v1192
    %1195 = vrot.lane.b32.xlu0 %v1193, 64
    %v1196 = vpop.permute.xlu0 %1195
    %s1198 = scalar_lea.vmem [#allocation11], 28
    %1199 = vst.msk [vmem:[%s1198 - $0x4] sm:$0xf0] %vm574, %v1196
    // Predicated region
    $region54: #{tpu_custom_call.1} parent=1 // pred_check
      _
    $region55: #{tpu_custom_call.1} parent=1 // pred_check_branch
      %1201 = sbr.rel (0) target = $region57
    $region56: #{tpu_custom_call.1} parent=1 // pred_region
      %s1203 = ssub.s32 512, 512
      %1204 = vsyncadd [#allocation4], %s1203
      %s1205 = sshll.u32 [#allocation11], 4
      %s1206 = int_to_ptr.vmem [resolvable:$true] %s1205
      %1211 = dma.vmem_to_hbm [thread:$0]  %s1206, 512, %s8, [#allocation4], 64, 64, 4
    $region57: #{tpu_custom_call.1} parent=1 // pred_fallthru
      _
    // Predicated region
    $region58: #{tpu_custom_call.1} parent=1 // pred_check
      _
    $region59: #{tpu_custom_call.1} parent=1 // pred_check_branch
      %1213 = sbr.rel (0) target = $region61
    $region60: #{tpu_custom_call.1} parent=1 // pred_region
      %1214 = dma.done [#allocation4], 512
    $region61: #{tpu_custom_call.1} parent=1 // pred_fallthru
      _
    %1215 = vsyncpa [#allocation3], 1
    %1216 = vsyncpa [#allocation6], 1
    %1217 = vsyncpa [#allocation9], 1
    %1218 = vsyncpa [#allocation4], 1

</llo_original>
